<compile_context>
chip_gen: v7x
topology: tpu7x:2x2x1
jax: 0.10.0
libtpu: 0.0.40
codegen_flags: <defaults>
</compile_context>

<pallas_src>
import jax
import jax.numpy as jnp
from jax.experimental import pallas as pl
from jax.experimental.pallas import tpu as pltpu


# ----------------------------------------------------------------------------
# Fused kernel: expand 1x1 -> BN/ReLU6 -> depthwise 3x3 -> BN/ReLU6 ->
#               project 1x1 -> BN -> + residual        (one batch elem / step)
# ----------------------------------------------------------------------------
def _make_fused_kernel(H, W, hidden):
    PAD = 8  # sublane offset of the interior inside the padded scratch (aligned)

    def kernel(x_ref, w1_ref, b1_ref, wdw_ref, b2_ref, w3_ref, b3_ref,
               o_ref, hp_ref):
        # x_ref : (1, H*W, Cin)   lane-narrow edge tensor (Cin = 8), tiny (8 KB)
        x = x_ref[0]                                              # (H*W, Cin)

        # --- 1) expand 1x1 (BN scale pre-folded into w1) + bias + ReLU6 -----
        h = jnp.dot(x, w1_ref[...], preferred_element_type=jnp.float32)
        h = jnp.clip(h + b1_ref[...], 0.0, 6.0)                   # (H*W, hidden)

        # --- build padded hidden activation in VMEM (3x3 halo, stride 1) ----
        hp_ref[...] = jnp.zeros_like(hp_ref)                      # cheap memset
        for i in range(H):                                        # aligned stores
            hp_ref[1 + i, PAD:PAD + W, :] = h[i * W:(i + 1) * W, :]

        # --- 2) depthwise 3x3 (BN scale pre-folded into w_dw) + bias + ReLU6
        wdw = wdw_ref[...]                                        # (3, 3, hidden)
        acc = None
        for dw in range(3):
            # one sublane-shifted load per W offset, reused for all 3 H offsets
            slab = hp_ref[:, PAD - 1 + dw:PAD - 1 + dw + W, :]    # (H+2, W, hid)
            for dh in range(3):
                tap = slab[dh:dh + H] * wdw[dh, dw]
                acc = tap if acc is None else acc + tap
        d = jnp.clip(acc + b2_ref[...], 0.0, 6.0)                 # (H, W, hidden)

        # --- 3) project 1x1 (BN scale pre-folded into w3) + bias + residual -
        d2 = d.reshape(H * W, hidden)          # lane dim preserved -> cheap cast
        y = jnp.dot(d2, w3_ref[...], preferred_element_type=jnp.float32)
        o_ref[0] = y + b3_ref[...] + x

    return kernel


def fused_inverted_residual(x_flat, w1, b1, w_dw, b2, w3, b3, H, W):
    # x_flat: (N, H*W, Cin) NHWC-flattened; weights already have BN scale folded.
    N, HW, Cin = x_flat.shape
    hidden = w1.shape[1]
    Cout = w3.shape[1]
    return pl.pallas_call(
        _make_fused_kernel(H, W, hidden),
        out_shape=jax.ShapeDtypeStruct((N, HW, Cout), jnp.float32),
        grid=(N,),
        in_specs=[
            pl.BlockSpec((1, HW, Cin), lambda n: (n, 0, 0)),
            pl.BlockSpec((Cin, hidden), lambda n: (0, 0)),
            pl.BlockSpec((1, hidden), lambda n: (0, 0)),
            pl.BlockSpec((3, 3, hidden), lambda n: (0, 0, 0)),
            pl.BlockSpec((1, hidden), lambda n: (0, 0)),
            pl.BlockSpec((hidden, Cout), lambda n: (0, 0)),
            pl.BlockSpec((1, Cout), lambda n: (0, 0)),
        ],
        out_specs=pl.BlockSpec((1, HW, Cout), lambda n: (n, 0, 0)),
        scratch_shapes=[pltpu.VMEM((H + 2, W + 16, hidden), jnp.float32)],
        compiler_params=pltpu.CompilerParams(
            dimension_semantics=("parallel",)),
    )(x_flat, w1, b1, w_dw, b2, w3, b3)


# ----------------------------------------------------------------------------
# Parameters (matching nn.Conv2d/nn.BatchNorm2d shapes, BN in eval mode)
# ----------------------------------------------------------------------------
def make_params(key, in_channels, out_channels, expand_ratio):
    hidden = round(in_channels * expand_ratio)
    ks = jax.random.split(key, 12)
    eps = 1e-5

    def bn_fold(kw, kb, km, kv, c):
        gamma = 1.0 + 0.1 * jax.random.normal(kw, (c,), jnp.float32)
        beta = 0.1 * jax.random.normal(kb, (c,), jnp.float32)
        mean = 0.1 * jax.random.normal(km, (c,), jnp.float32)
        var = jax.random.uniform(kv, (c,), jnp.float32, 0.5, 1.5)
        scale = gamma / jnp.sqrt(var + eps)
        bias = beta - mean * scale
        return scale.reshape(1, c), bias.reshape(1, c)

    params = {
        # expand 1x1: torch weight (hidden, Cin, 1, 1) -> (Cin, hidden)
        "w1": 0.1 * jax.random.normal(ks[0], (in_channels, hidden), jnp.float32),
        # depthwise 3x3: torch weight (hidden, 1, 3, 3) -> (3, 3, hidden)
        "w_dw": 0.1 * jax.random.normal(ks[1], (3, 3, hidden), jnp.float32),
        # project 1x1: torch weight (Cout, hidden, 1, 1) -> (hidden, Cout)
        "w3": 0.1 * jax.random.normal(ks[2], (hidden, out_channels), jnp.float32),
    }
    params["s1"], params["b1"] = bn_fold(ks[3], ks[4], ks[5], ks[6], hidden)
    params["s2"], params["b2"] = bn_fold(ks[7], ks[8], ks[9], ks[10], hidden)
    s3, b3 = bn_fold(*jax.random.split(ks[11], 4), out_channels)
    params["s3"], params["b3"] = s3, b3
    return params


def fold_bn_into_weights(params):
    # One-time transform: fold the per-channel BN scale into the conv weights
    # (output-channel axis), keep only the bias for in-kernel addition.
    return {
        "w1": params["w1"] * params["s1"],          # (Cin, hidden) * (1, hidden)
        "b1": params["b1"],
        "w_dw": params["w_dw"] * params["s2"],      # (3,3,hidden) * (1,hidden)
        "b2": params["b2"],
        "w3": params["w3"] * params["s3"],          # (hidden, Cout) * (1, Cout)
        "b3": params["b3"],
    }


# ----------------------------------------------------------------------------
# Module wrapper (external layout NCHW == PyTorch; internal NHWC)
# ----------------------------------------------------------------------------
def inverted_residual_forward(x_nchw, folded):
    N, C, H, W = x_nchw.shape
    Cout = folded["w3"].shape[1]
    x_nhwc = jnp.transpose(x_nchw, (0, 2, 3, 1)).astype(jnp.float32)
    x_flat = x_nhwc.reshape(N, H * W, C)          # free reshape, NHWC row-major
    out_flat = fused_inverted_residual(
        x_flat, folded["w1"], folded["b1"], folded["w_dw"], folded["b2"],
        folded["w3"], folded["b3"], H, W)
    out_nhwc = out_flat.reshape(N, H, W, Cout)
    return jnp.transpose(out_nhwc, (0, 3, 1, 2))


def reference_forward(x_nchw, params):
    # Pure-JAX reference (unfolded weights, explicit BN affine) for validation.
    N, C, H, W = x_nchw.shape
    x = jnp.transpose(x_nchw, (0, 2, 3, 1)).astype(jnp.float32)
    h = jnp.einsum("nhwc,ce->nhwe", x, params["w1"])
    h = jnp.clip(h * params["s1"] + params["b1"], 0.0, 6.0)
    hp = jnp.pad(h, ((0, 0), (1, 1), (1, 1), (0, 0)))
    d = jnp.zeros_like(h)
    for dh in range(3):
        for dw in range(3):
            d = d + hp[:, dh:dh + H, dw:dw + W, :] * params["w_dw"][dh, dw, :]
    d = jnp.clip(d * params["s2"] + params["b2"], 0.0, 6.0)
    y = jnp.einsum("nhwe,eo->nhwo", d, params["w3"])
    y = y * params["s3"] + params["b3"] + x
    return jnp.transpose(y, (0, 3, 1, 2))


if __name__ == "__main__":
    in_channels = 8
    out_channels = 8
    stride = 1
    expand_ratio = 6
    N, H, W = 2, 16, 16

    key = jax.random.PRNGKey(0)
    k_x, k_p = jax.random.split(key)
    x = jax.random.normal(k_x, (N, in_channels, H, W), jnp.float32)
    params = make_params(k_p, in_channels, out_channels, expand_ratio)
    folded = fold_bn_into_weights(params)

    out = inverted_residual_forward(x, folded)
    out = jax.block_until_ready(out)

    ref = reference_forward(x, params)
    assert out.shape == (N, out_channels, H, W), out.shape
    assert jnp.allclose(out, ref, atol=1e-4, rtol=1e-4), float(
        jnp.max(jnp.abs(out - ref)))
    print("KERNEL_OK")
</pallas_src>

<mosaic_0001>
module attributes {stable_mosaic.version = 11 : i64} {
  func.func @kernel(%arg0: i32, %arg1: memref<1x256x8xf32, #tpu.memory_space<vmem>>, %arg2: memref<8x48xf32, #tpu.memory_space<vmem>>, %arg3: memref<1x48xf32, #tpu.memory_space<vmem>>, %arg4: memref<3x3x48xf32, #tpu.memory_space<vmem>>, %arg5: memref<1x48xf32, #tpu.memory_space<vmem>>, %arg6: memref<48x8xf32, #tpu.memory_space<vmem>>, %arg7: memref<1x8xf32, #tpu.memory_space<vmem>>, %arg8: memref<1x256x8xf32, #tpu.memory_space<vmem>>, %arg9: memref<18x32x48xf32, #tpu.memory_space<vmem>>) attributes {dimension_semantics = [#tpu.dimension_semantics<parallel>], iteration_bounds = array<i64: 2>, scalar_prefetch = 0 : i64, scratch_operands = 1 : i64, tpu.core_type = #tpu.core_type<tc>, window_params = [{transform_indices = @transform_0, window_bounds = array<i64: 1, 256, 8>}, {pipeline_mode = #tpu.pipeline_mode<synchronous>, transform_indices = @transform_1, window_bounds = array<i64: 8, 48>}, {pipeline_mode = #tpu.pipeline_mode<synchronous>, transform_indices = @transform_2, window_bounds = array<i64: 1, 48>}, {pipeline_mode = #tpu.pipeline_mode<synchronous>, transform_indices = @transform_3, window_bounds = array<i64: 3, 3, 48>}, {pipeline_mode = #tpu.pipeline_mode<synchronous>, transform_indices = @transform_4, window_bounds = array<i64: 1, 48>}, {pipeline_mode = #tpu.pipeline_mode<synchronous>, transform_indices = @transform_5, window_bounds = array<i64: 48, 8>}, {pipeline_mode = #tpu.pipeline_mode<synchronous>, transform_indices = @transform_6, window_bounds = array<i64: 1, 8>}, {transform_indices = @transform_7, window_bounds = array<i64: 1, 256, 8>}]} {
    %c0 = arith.constant 0 : index
    %c0_0 = arith.constant 0 : index
    %c0_1 = arith.constant 0 : index
    %0 = vector.load %arg1[%c0, %c0_0, %c0_1] : memref<1x256x8xf32, #tpu.memory_space<vmem>>, vector<1x256x8xf32>
    %1 = vector.shape_cast %0 : vector<1x256x8xf32> to vector<256x8xf32>
    %c0_2 = arith.constant 0 : index
    %c0_3 = arith.constant 0 : index
    %2 = vector.load %arg2[%c0_2, %c0_3] : memref<8x48xf32, #tpu.memory_space<vmem>>, vector<8x48xf32>
    %cst = arith.constant dense<0.000000e+00> : vector<256x48xf32>
    %3 = tpu.matmul %1, %2, %cst {dimension_numbers = #tpu.dot_dimension_numbers<[1], [0], [0], [1], [0, 0, 1, 1], [], []>} : vector<256x8xf32>, vector<8x48xf32>, vector<256x48xf32> -> vector<256x48xf32>
    %c0_4 = arith.constant 0 : index
    %c0_5 = arith.constant 0 : index
    %4 = vector.load %arg3[%c0_4, %c0_5] : memref<1x48xf32, #tpu.memory_space<vmem>>, vector<1x48xf32>
    %5 = vector.broadcast %4 : vector<1x48xf32> to vector<256x48xf32>
    %6 = arith.addf %3, %5 : vector<256x48xf32>
    %cst_6 = arith.constant 0.000000e+00 : f32
    %cst_7 = arith.constant 6.000000e+00 : f32
    %7 = vector.broadcast %cst_6 : f32 to vector<256x48xf32>
    %8 = arith.maximumf %7, %6 : vector<256x48xf32>
    %9 = vector.broadcast %cst_7 : f32 to vector<256x48xf32>
    %10 = arith.minimumf %9, %8 : vector<256x48xf32>
    %cst_8 = arith.constant 0.000000e+00 : f32
    %11 = vector.broadcast %cst_8 : f32 to vector<18x32x48xf32>
    %c0_9 = arith.constant 0 : index
    %c0_10 = arith.constant 0 : index
    %c0_11 = arith.constant 0 : index
    %12 = vector.load %arg9[%c0_9, %c0_10, %c0_11] : memref<18x32x48xf32, #tpu.memory_space<vmem>>, vector<18x32x48xf32>
    tpu.vector_store %arg9[%c0_9, %c0_10, %c0_11], %11 {strides = array<i32>} : memref<18x32x48xf32, #tpu.memory_space<vmem>>, vector<18x32x48xf32>,
    %13 = vector.extract_strided_slice %10 {offsets = [0, 0], sizes = [16, 48], strides = [1, 1]} : vector<256x48xf32> to vector<16x48xf32>
    %c1 = arith.constant 1 : index
    %c8 = arith.constant 8 : index
    %c0_12 = arith.constant 0 : index
    %14 = vector.load %arg9[%c1, %c8, %c0_12] : memref<18x32x48xf32, #tpu.memory_space<vmem>>, vector<1x16x48xf32>
    %15 = vector.shape_cast %14 : vector<1x16x48xf32> to vector<16x48xf32>
    %16 = vector.shape_cast %13 : vector<16x48xf32> to vector<1x16x48xf32>
    tpu.vector_store %arg9[%c1, %c8, %c0_12], %16 {strides = array<i32>} : memref<18x32x48xf32, #tpu.memory_space<vmem>>, vector<1x16x48xf32>,
    %17 = vector.extract_strided_slice %10 {offsets = [16, 0], sizes = [16, 48], strides = [1, 1]} : vector<256x48xf32> to vector<16x48xf32>
    %c2 = arith.constant 2 : index
    %c8_13 = arith.constant 8 : index
    %c0_14 = arith.constant 0 : index
    %18 = vector.load %arg9[%c2, %c8_13, %c0_14] : memref<18x32x48xf32, #tpu.memory_space<vmem>>, vector<1x16x48xf32>
    %19 = vector.shape_cast %18 : vector<1x16x48xf32> to vector<16x48xf32>
    %20 = vector.shape_cast %17 : vector<16x48xf32> to vector<1x16x48xf32>
    tpu.vector_store %arg9[%c2, %c8_13, %c0_14], %20 {strides = array<i32>} : memref<18x32x48xf32, #tpu.memory_space<vmem>>, vector<1x16x48xf32>,
    %21 = vector.extract_strided_slice %10 {offsets = [32, 0], sizes = [16, 48], strides = [1, 1]} : vector<256x48xf32> to vector<16x48xf32>
    %c3 = arith.constant 3 : index
    %c8_15 = arith.constant 8 : index
    %c0_16 = arith.constant 0 : index
    %22 = vector.load %arg9[%c3, %c8_15, %c0_16] : memref<18x32x48xf32, #tpu.memory_space<vmem>>, vector<1x16x48xf32>
    %23 = vector.shape_cast %22 : vector<1x16x48xf32> to vector<16x48xf32>
    %24 = vector.shape_cast %21 : vector<16x48xf32> to vector<1x16x48xf32>
    tpu.vector_store %arg9[%c3, %c8_15, %c0_16], %24 {strides = array<i32>} : memref<18x32x48xf32, #tpu.memory_space<vmem>>, vector<1x16x48xf32>,
    %25 = vector.extract_strided_slice %10 {offsets = [48, 0], sizes = [16, 48], strides = [1, 1]} : vector<256x48xf32> to vector<16x48xf32>
    %c4 = arith.constant 4 : index
    %c8_17 = arith.constant 8 : index
    %c0_18 = arith.constant 0 : index
    %26 = vector.load %arg9[%c4, %c8_17, %c0_18] : memref<18x32x48xf32, #tpu.memory_space<vmem>>, vector<1x16x48xf32>
    %27 = vector.shape_cast %26 : vector<1x16x48xf32> to vector<16x48xf32>
    %28 = vector.shape_cast %25 : vector<16x48xf32> to vector<1x16x48xf32>
    tpu.vector_store %arg9[%c4, %c8_17, %c0_18], %28 {strides = array<i32>} : memref<18x32x48xf32, #tpu.memory_space<vmem>>, vector<1x16x48xf32>,
    %29 = vector.extract_strided_slice %10 {offsets = [64, 0], sizes = [16, 48], strides = [1, 1]} : vector<256x48xf32> to vector<16x48xf32>
    %c5 = arith.constant 5 : index
    %c8_19 = arith.constant 8 : index
    %c0_20 = arith.constant 0 : index
    %30 = vector.load %arg9[%c5, %c8_19, %c0_20] : memref<18x32x48xf32, #tpu.memory_space<vmem>>, vector<1x16x48xf32>
    %31 = vector.shape_cast %30 : vector<1x16x48xf32> to vector<16x48xf32>
    %32 = vector.shape_cast %29 : vector<16x48xf32> to vector<1x16x48xf32>
    tpu.vector_store %arg9[%c5, %c8_19, %c0_20], %32 {strides = array<i32>} : memref<18x32x48xf32, #tpu.memory_space<vmem>>, vector<1x16x48xf32>,
    %33 = vector.extract_strided_slice %10 {offsets = [80, 0], sizes = [16, 48], strides = [1, 1]} : vector<256x48xf32> to vector<16x48xf32>
    %c6 = arith.constant 6 : index
    %c8_21 = arith.constant 8 : index
    %c0_22 = arith.constant 0 : index
    %34 = vector.load %arg9[%c6, %c8_21, %c0_22] : memref<18x32x48xf32, #tpu.memory_space<vmem>>, vector<1x16x48xf32>
    %35 = vector.shape_cast %34 : vector<1x16x48xf32> to vector<16x48xf32>
    %36 = vector.shape_cast %33 : vector<16x48xf32> to vector<1x16x48xf32>
    tpu.vector_store %arg9[%c6, %c8_21, %c0_22], %36 {strides = array<i32>} : memref<18x32x48xf32, #tpu.memory_space<vmem>>, vector<1x16x48xf32>,
    %37 = vector.extract_strided_slice %10 {offsets = [96, 0], sizes = [16, 48], strides = [1, 1]} : vector<256x48xf32> to vector<16x48xf32>
    %c7 = arith.constant 7 : index
    %c8_23 = arith.constant 8 : index
    %c0_24 = arith.constant 0 : index
    %38 = vector.load %arg9[%c7, %c8_23, %c0_24] : memref<18x32x48xf32, #tpu.memory_space<vmem>>, vector<1x16x48xf32>
    %39 = vector.shape_cast %38 : vector<1x16x48xf32> to vector<16x48xf32>
    %40 = vector.shape_cast %37 : vector<16x48xf32> to vector<1x16x48xf32>
    tpu.vector_store %arg9[%c7, %c8_23, %c0_24], %40 {strides = array<i32>} : memref<18x32x48xf32, #tpu.memory_space<vmem>>, vector<1x16x48xf32>,
    %41 = vector.extract_strided_slice %10 {offsets = [112, 0], sizes = [16, 48], strides = [1, 1]} : vector<256x48xf32> to vector<16x48xf32>
    %c8_25 = arith.constant 8 : index
    %c8_26 = arith.constant 8 : index
    %c0_27 = arith.constant 0 : index
    %42 = vector.load %arg9[%c8_25, %c8_26, %c0_27] : memref<18x32x48xf32, #tpu.memory_space<vmem>>, vector<1x16x48xf32>
    %43 = vector.shape_cast %42 : vector<1x16x48xf32> to vector<16x48xf32>
    %44 = vector.shape_cast %41 : vector<16x48xf32> to vector<1x16x48xf32>
    tpu.vector_store %arg9[%c8_25, %c8_26, %c0_27], %44 {strides = array<i32>} : memref<18x32x48xf32, #tpu.memory_space<vmem>>, vector<1x16x48xf32>,
    %45 = vector.extract_strided_slice %10 {offsets = [128, 0], sizes = [16, 48], strides = [1, 1]} : vector<256x48xf32> to vector<16x48xf32>
    %c9 = arith.constant 9 : index
    %c8_28 = arith.constant 8 : index
    %c0_29 = arith.constant 0 : index
    %46 = vector.load %arg9[%c9, %c8_28, %c0_29] : memref<18x32x48xf32, #tpu.memory_space<vmem>>, vector<1x16x48xf32>
    %47 = vector.shape_cast %46 : vector<1x16x48xf32> to vector<16x48xf32>
    %48 = vector.shape_cast %45 : vector<16x48xf32> to vector<1x16x48xf32>
    tpu.vector_store %arg9[%c9, %c8_28, %c0_29], %48 {strides = array<i32>} : memref<18x32x48xf32, #tpu.memory_space<vmem>>, vector<1x16x48xf32>,
    %49 = vector.extract_strided_slice %10 {offsets = [144, 0], sizes = [16, 48], strides = [1, 1]} : vector<256x48xf32> to vector<16x48xf32>
    %c10 = arith.constant 10 : index
    %c8_30 = arith.constant 8 : index
    %c0_31 = arith.constant 0 : index
    %50 = vector.load %arg9[%c10, %c8_30, %c0_31] : memref<18x32x48xf32, #tpu.memory_space<vmem>>, vector<1x16x48xf32>
    %51 = vector.shape_cast %50 : vector<1x16x48xf32> to vector<16x48xf32>
    %52 = vector.shape_cast %49 : vector<16x48xf32> to vector<1x16x48xf32>
    tpu.vector_store %arg9[%c10, %c8_30, %c0_31], %52 {strides = array<i32>} : memref<18x32x48xf32, #tpu.memory_space<vmem>>, vector<1x16x48xf32>,
    %53 = vector.extract_strided_slice %10 {offsets = [160, 0], sizes = [16, 48], strides = [1, 1]} : vector<256x48xf32> to vector<16x48xf32>
    %c11 = arith.constant 11 : index
    %c8_32 = arith.constant 8 : index
    %c0_33 = arith.constant 0 : index
    %54 = vector.load %arg9[%c11, %c8_32, %c0_33] : memref<18x32x48xf32, #tpu.memory_space<vmem>>, vector<1x16x48xf32>
    %55 = vector.shape_cast %54 : vector<1x16x48xf32> to vector<16x48xf32>
    %56 = vector.shape_cast %53 : vector<16x48xf32> to vector<1x16x48xf32>
    tpu.vector_store %arg9[%c11, %c8_32, %c0_33], %56 {strides = array<i32>} : memref<18x32x48xf32, #tpu.memory_space<vmem>>, vector<1x16x48xf32>,
    %57 = vector.extract_strided_slice %10 {offsets = [176, 0], sizes = [16, 48], strides = [1, 1]} : vector<256x48xf32> to vector<16x48xf32>
    %c12 = arith.constant 12 : index
    %c8_34 = arith.constant 8 : index
    %c0_35 = arith.constant 0 : index
    %58 = vector.load %arg9[%c12, %c8_34, %c0_35] : memref<18x32x48xf32, #tpu.memory_space<vmem>>, vector<1x16x48xf32>
    %59 = vector.shape_cast %58 : vector<1x16x48xf32> to vector<16x48xf32>
    %60 = vector.shape_cast %57 : vector<16x48xf32> to vector<1x16x48xf32>
    tpu.vector_store %arg9[%c12, %c8_34, %c0_35], %60 {strides = array<i32>} : memref<18x32x48xf32, #tpu.memory_space<vmem>>, vector<1x16x48xf32>,
    %61 = vector.extract_strided_slice %10 {offsets = [192, 0], sizes = [16, 48], strides = [1, 1]} : vector<256x48xf32> to vector<16x48xf32>
    %c13 = arith.constant 13 : index
    %c8_36 = arith.constant 8 : index
    %c0_37 = arith.constant 0 : index
    %62 = vector.load %arg9[%c13, %c8_36, %c0_37] : memref<18x32x48xf32, #tpu.memory_space<vmem>>, vector<1x16x48xf32>
    %63 = vector.shape_cast %62 : vector<1x16x48xf32> to vector<16x48xf32>
    %64 = vector.shape_cast %61 : vector<16x48xf32> to vector<1x16x48xf32>
    tpu.vector_store %arg9[%c13, %c8_36, %c0_37], %64 {strides = array<i32>} : memref<18x32x48xf32, #tpu.memory_space<vmem>>, vector<1x16x48xf32>,
    %65 = vector.extract_strided_slice %10 {offsets = [208, 0], sizes = [16, 48], strides = [1, 1]} : vector<256x48xf32> to vector<16x48xf32>
    %c14 = arith.constant 14 : index
    %c8_38 = arith.constant 8 : index
    %c0_39 = arith.constant 0 : index
    %66 = vector.load %arg9[%c14, %c8_38, %c0_39] : memref<18x32x48xf32, #tpu.memory_space<vmem>>, vector<1x16x48xf32>
    %67 = vector.shape_cast %66 : vector<1x16x48xf32> to vector<16x48xf32>
    %68 = vector.shape_cast %65 : vector<16x48xf32> to vector<1x16x48xf32>
    tpu.vector_store %arg9[%c14, %c8_38, %c0_39], %68 {strides = array<i32>} : memref<18x32x48xf32, #tpu.memory_space<vmem>>, vector<1x16x48xf32>,
    %69 = vector.extract_strided_slice %10 {offsets = [224, 0], sizes = [16, 48], strides = [1, 1]} : vector<256x48xf32> to vector<16x48xf32>
    %c15 = arith.constant 15 : index
    %c8_40 = arith.constant 8 : index
    %c0_41 = arith.constant 0 : index
    %70 = vector.load %arg9[%c15, %c8_40, %c0_41] : memref<18x32x48xf32, #tpu.memory_space<vmem>>, vector<1x16x48xf32>
    %71 = vector.shape_cast %70 : vector<1x16x48xf32> to vector<16x48xf32>
    %72 = vector.shape_cast %69 : vector<16x48xf32> to vector<1x16x48xf32>
    tpu.vector_store %arg9[%c15, %c8_40, %c0_41], %72 {strides = array<i32>} : memref<18x32x48xf32, #tpu.memory_space<vmem>>, vector<1x16x48xf32>,
    %73 = vector.extract_strided_slice %10 {offsets = [240, 0], sizes = [16, 48], strides = [1, 1]} : vector<256x48xf32> to vector<16x48xf32>
    %c16 = arith.constant 16 : index
    %c8_42 = arith.constant 8 : index
    %c0_43 = arith.constant 0 : index
    %74 = vector.load %arg9[%c16, %c8_42, %c0_43] : memref<18x32x48xf32, #tpu.memory_space<vmem>>, vector<1x16x48xf32>
    %75 = vector.shape_cast %74 : vector<1x16x48xf32> to vector<16x48xf32>
    %76 = vector.shape_cast %73 : vector<16x48xf32> to vector<1x16x48xf32>
    tpu.vector_store %arg9[%c16, %c8_42, %c0_43], %76 {strides = array<i32>} : memref<18x32x48xf32, #tpu.memory_space<vmem>>, vector<1x16x48xf32>,
    %c0_44 = arith.constant 0 : index
    %c0_45 = arith.constant 0 : index
    %c0_46 = arith.constant 0 : index
    %77 = vector.load %arg4[%c0_44, %c0_45, %c0_46] : memref<3x3x48xf32, #tpu.memory_space<vmem>>, vector<3x3x48xf32>
    %c0_47 = arith.constant 0 : index
    %c7_48 = arith.constant 7 : index
    %c0_49 = arith.constant 0 : index
    %78 = vector.load %arg9[%c0_47, %c7_48, %c0_49] : memref<18x32x48xf32, #tpu.memory_space<vmem>>, vector<18x16x48xf32>
    %79 = vector.extract_strided_slice %78 {offsets = [0, 0, 0], sizes = [16, 16, 48], strides = [1, 1, 1]} : vector<18x16x48xf32> to vector<16x16x48xf32>
    %80 = vector.extract_strided_slice %77 {offsets = [0, 0, 0], sizes = [1, 1, 48], strides = [1, 1, 1]} : vector<3x3x48xf32> to vector<1x1x48xf32>
    %81 = vector.shape_cast %80 : vector<1x1x48xf32> to vector<48xf32>
    %82 = vector.shape_cast %81 : vector<48xf32> to vector<1x1x48xf32>
    %83 = vector.broadcast %82 : vector<1x1x48xf32> to vector<16x16x48xf32>
    %84 = arith.mulf %79, %83 : vector<16x16x48xf32>
    %85 = vector.extract_strided_slice %78 {offsets = [1, 0, 0], sizes = [16, 16, 48], strides = [1, 1, 1]} : vector<18x16x48xf32> to vector<16x16x48xf32>
    %86 = vector.extract_strided_slice %77 {offsets = [1, 0, 0], sizes = [1, 1, 48], strides = [1, 1, 1]} : vector<3x3x48xf32> to vector<1x1x48xf32>
    %87 = vector.shape_cast %86 : vector<1x1x48xf32> to vector<48xf32>
    %88 = vector.shape_cast %87 : vector<48xf32> to vector<1x1x48xf32>
    %89 = vector.broadcast %88 : vector<1x1x48xf32> to vector<16x16x48xf32>
    %90 = arith.mulf %85, %89 : vector<16x16x48xf32>
    %91 = arith.addf %84, %90 : vector<16x16x48xf32>
    %92 = vector.extract_strided_slice %78 {offsets = [2, 0, 0], sizes = [16, 16, 48], strides = [1, 1, 1]} : vector<18x16x48xf32> to vector<16x16x48xf32>
    %93 = vector.extract_strided_slice %77 {offsets = [2, 0, 0], sizes = [1, 1, 48], strides = [1, 1, 1]} : vector<3x3x48xf32> to vector<1x1x48xf32>
    %94 = vector.shape_cast %93 : vector<1x1x48xf32> to vector<48xf32>
    %95 = vector.shape_cast %94 : vector<48xf32> to vector<1x1x48xf32>
    %96 = vector.broadcast %95 : vector<1x1x48xf32> to vector<16x16x48xf32>
    %97 = arith.mulf %92, %96 : vector<16x16x48xf32>
    %98 = arith.addf %91, %97 : vector<16x16x48xf32>
    %c0_50 = arith.constant 0 : index
    %c8_51 = arith.constant 8 : index
    %c0_52 = arith.constant 0 : index
    %99 = vector.load %arg9[%c0_50, %c8_51, %c0_52] : memref<18x32x48xf32, #tpu.memory_space<vmem>>, vector<18x16x48xf32>
    %100 = vector.extract_strided_slice %99 {offsets = [0, 0, 0], sizes = [16, 16, 48], strides = [1, 1, 1]} : vector<18x16x48xf32> to vector<16x16x48xf32>
    %101 = vector.extract_strided_slice %77 {offsets = [0, 1, 0], sizes = [1, 1, 48], strides = [1, 1, 1]} : vector<3x3x48xf32> to vector<1x1x48xf32>
    %102 = vector.shape_cast %101 : vector<1x1x48xf32> to vector<48xf32>
    %103 = vector.shape_cast %102 : vector<48xf32> to vector<1x1x48xf32>
    %104 = vector.broadcast %103 : vector<1x1x48xf32> to vector<16x16x48xf32>
    %105 = arith.mulf %100, %104 : vector<16x16x48xf32>
    %106 = arith.addf %98, %105 : vector<16x16x48xf32>
    %107 = vector.extract_strided_slice %99 {offsets = [1, 0, 0], sizes = [16, 16, 48], strides = [1, 1, 1]} : vector<18x16x48xf32> to vector<16x16x48xf32>
    %108 = vector.extract_strided_slice %77 {offsets = [1, 1, 0], sizes = [1, 1, 48], strides = [1, 1, 1]} : vector<3x3x48xf32> to vector<1x1x48xf32>
    %109 = vector.shape_cast %108 : vector<1x1x48xf32> to vector<48xf32>
    %110 = vector.shape_cast %109 : vector<48xf32> to vector<1x1x48xf32>
    %111 = vector.broadcast %110 : vector<1x1x48xf32> to vector<16x16x48xf32>
    %112 = arith.mulf %107, %111 : vector<16x16x48xf32>
    %113 = arith.addf %106, %112 : vector<16x16x48xf32>
    %114 = vector.extract_strided_slice %99 {offsets = [2, 0, 0], sizes = [16, 16, 48], strides = [1, 1, 1]} : vector<18x16x48xf32> to vector<16x16x48xf32>
    %115 = vector.extract_strided_slice %77 {offsets = [2, 1, 0], sizes = [1, 1, 48], strides = [1, 1, 1]} : vector<3x3x48xf32> to vector<1x1x48xf32>
    %116 = vector.shape_cast %115 : vector<1x1x48xf32> to vector<48xf32>
    %117 = vector.shape_cast %116 : vector<48xf32> to vector<1x1x48xf32>
    %118 = vector.broadcast %117 : vector<1x1x48xf32> to vector<16x16x48xf32>
    %119 = arith.mulf %114, %118 : vector<16x16x48xf32>
    %120 = arith.addf %113, %119 : vector<16x16x48xf32>
    %c0_53 = arith.constant 0 : index
    %c9_54 = arith.constant 9 : index
    %c0_55 = arith.constant 0 : index
    %121 = vector.load %arg9[%c0_53, %c9_54, %c0_55] : memref<18x32x48xf32, #tpu.memory_space<vmem>>, vector<18x16x48xf32>
    %122 = vector.extract_strided_slice %121 {offsets = [0, 0, 0], sizes = [16, 16, 48], strides = [1, 1, 1]} : vector<18x16x48xf32> to vector<16x16x48xf32>
    %123 = vector.extract_strided_slice %77 {offsets = [0, 2, 0], sizes = [1, 1, 48], strides = [1, 1, 1]} : vector<3x3x48xf32> to vector<1x1x48xf32>
    %124 = vector.shape_cast %123 : vector<1x1x48xf32> to vector<48xf32>
    %125 = vector.shape_cast %124 : vector<48xf32> to vector<1x1x48xf32>
    %126 = vector.broadcast %125 : vector<1x1x48xf32> to vector<16x16x48xf32>
    %127 = arith.mulf %122, %126 : vector<16x16x48xf32>
    %128 = arith.addf %120, %127 : vector<16x16x48xf32>
    %129 = vector.extract_strided_slice %121 {offsets = [1, 0, 0], sizes = [16, 16, 48], strides = [1, 1, 1]} : vector<18x16x48xf32> to vector<16x16x48xf32>
    %130 = vector.extract_strided_slice %77 {offsets = [1, 2, 0], sizes = [1, 1, 48], strides = [1, 1, 1]} : vector<3x3x48xf32> to vector<1x1x48xf32>
    %131 = vector.shape_cast %130 : vector<1x1x48xf32> to vector<48xf32>
    %132 = vector.shape_cast %131 : vector<48xf32> to vector<1x1x48xf32>
    %133 = vector.broadcast %132 : vector<1x1x48xf32> to vector<16x16x48xf32>
    %134 = arith.mulf %129, %133 : vector<16x16x48xf32>
    %135 = arith.addf %128, %134 : vector<16x16x48xf32>
    %136 = vector.extract_strided_slice %121 {offsets = [2, 0, 0], sizes = [16, 16, 48], strides = [1, 1, 1]} : vector<18x16x48xf32> to vector<16x16x48xf32>
    %137 = vector.extract_strided_slice %77 {offsets = [2, 2, 0], sizes = [1, 1, 48], strides = [1, 1, 1]} : vector<3x3x48xf32> to vector<1x1x48xf32>
    %138 = vector.shape_cast %137 : vector<1x1x48xf32> to vector<48xf32>
    %139 = vector.shape_cast %138 : vector<48xf32> to vector<1x1x48xf32>
    %140 = vector.broadcast %139 : vector<1x1x48xf32> to vector<16x16x48xf32>
    %141 = arith.mulf %136, %140 : vector<16x16x48xf32>
    %142 = arith.addf %135, %141 : vector<16x16x48xf32>
    %c0_56 = arith.constant 0 : index
    %c0_57 = arith.constant 0 : index
    %143 = vector.load %arg5[%c0_56, %c0_57] : memref<1x48xf32, #tpu.memory_space<vmem>>, vector<1x48xf32>
    %144 = vector.shape_cast %143 : vector<1x48xf32> to vector<1x1x48xf32>
    %145 = vector.broadcast %144 : vector<1x1x48xf32> to vector<16x16x48xf32>
    %146 = arith.addf %142, %145 : vector<16x16x48xf32>
    %cst_58 = arith.constant 0.000000e+00 : f32
    %cst_59 = arith.constant 6.000000e+00 : f32
    %147 = vector.broadcast %cst_58 : f32 to vector<16x16x48xf32>
    %148 = arith.maximumf %147, %146 : vector<16x16x48xf32>
    %149 = vector.broadcast %cst_59 : f32 to vector<16x16x48xf32>
    %150 = arith.minimumf %149, %148 : vector<16x16x48xf32>
    %151 = vector.shape_cast %150 : vector<16x16x48xf32> to vector<256x48xf32>
    %c0_60 = arith.constant 0 : index
    %c0_61 = arith.constant 0 : index
    %152 = vector.load %arg6[%c0_60, %c0_61] : memref<48x8xf32, #tpu.memory_space<vmem>>, vector<48x8xf32>
    %cst_62 = arith.constant dense<0.000000e+00> : vector<256x8xf32>
    %153 = tpu.matmul %151, %152, %cst_62 {dimension_numbers = #tpu.dot_dimension_numbers<[1], [0], [0], [1], [0, 0, 1, 1], [], []>} : vector<256x48xf32>, vector<48x8xf32>, vector<256x8xf32> -> vector<256x8xf32>
    %c0_63 = arith.constant 0 : index
    %c0_64 = arith.constant 0 : index
    %154 = vector.load %arg7[%c0_63, %c0_64] : memref<1x8xf32, #tpu.memory_space<vmem>>, vector<1x8xf32>
    %155 = vector.broadcast %154 : vector<1x8xf32> to vector<256x8xf32>
    %156 = arith.addf %153, %155 : vector<256x8xf32>
    %157 = arith.addf %156, %1 : vector<256x8xf32>
    %c0_65 = arith.constant 0 : index
    %c0_66 = arith.constant 0 : index
    %c0_67 = arith.constant 0 : index
    %158 = vector.load %arg8[%c0_65, %c0_66, %c0_67] : memref<1x256x8xf32, #tpu.memory_space<vmem>>, vector<1x256x8xf32>
    %159 = vector.shape_cast %158 : vector<1x256x8xf32> to vector<256x8xf32>
    %160 = vector.shape_cast %157 : vector<256x8xf32> to vector<1x256x8xf32>
    tpu.vector_store %arg8[%c0_65, %c0_66, %c0_67], %160 {strides = array<i32>} : memref<1x256x8xf32, #tpu.memory_space<vmem>>, vector<1x256x8xf32>,
    return
  }
  func.func @transform_0(%arg0: i32) -> (i32, i32, i32) {
    %c0_i32 = arith.constant 0 : i32
    %c0_i32_0 = arith.constant 0 : i32
    %c0_i32_1 = arith.constant 0 : i32
    return %arg0, %c0_i32, %c0_i32_0 : i32, i32, i32
  }
  func.func @transform_1(%arg0: i32) -> (i32, i32) {
    %c0_i32 = arith.constant 0 : i32
    %c0_i32_0 = arith.constant 0 : i32
    %c0_i32_1 = arith.constant 0 : i32
    return %c0_i32, %c0_i32_0 : i32, i32
  }
  func.func @transform_2(%arg0: i32) -> (i32, i32) {
    %c0_i32 = arith.constant 0 : i32
    %c0_i32_0 = arith.constant 0 : i32
    %c0_i32_1 = arith.constant 0 : i32
    return %c0_i32, %c0_i32_0 : i32, i32
  }
  func.func @transform_3(%arg0: i32) -> (i32, i32, i32) {
    %c0_i32 = arith.constant 0 : i32
    %c0_i32_0 = arith.constant 0 : i32
    %c0_i32_1 = arith.constant 0 : i32
    %c0_i32_2 = arith.constant 0 : i32
    return %c0_i32, %c0_i32_0, %c0_i32_1 : i32, i32, i32
  }
  func.func @transform_4(%arg0: i32) -> (i32, i32) {
    %c0_i32 = arith.constant 0 : i32
    %c0_i32_0 = arith.constant 0 : i32
    %c0_i32_1 = arith.constant 0 : i32
    return %c0_i32, %c0_i32_0 : i32, i32
  }
  func.func @transform_5(%arg0: i32) -> (i32, i32) {
    %c0_i32 = arith.constant 0 : i32
    %c0_i32_0 = arith.constant 0 : i32
    %c0_i32_1 = arith.constant 0 : i32
    return %c0_i32, %c0_i32_0 : i32, i32
  }
  func.func @transform_6(%arg0: i32) -> (i32, i32) {
    %c0_i32 = arith.constant 0 : i32
    %c0_i32_0 = arith.constant 0 : i32
    %c0_i32_1 = arith.constant 0 : i32
    return %c0_i32, %c0_i32_0 : i32, i32
  }
  func.func @transform_7(%arg0: i32) -> (i32, i32, i32) {
    %c0_i32 = arith.constant 0 : i32
    %c0_i32_0 = arith.constant 0 : i32
    %c0_i32_1 = arith.constant 0 : i32
    return %arg0, %c0_i32, %c0_i32_0 : i32, i32, i32
  }
}

</mosaic_0001>

<llo_original>
// kernel: tpu_custom_call.1
$region0: #{tpu_custom_call.1}
  #allocation0 [shape = 'u32[]', space=smem, size = 0x4, offset = 0x4, fixed_abs, tag = 'smem constant byte address 0x4 - core index']
  #allocation1 [shape = 'u32[144,128]{1,0:T(1,128)}', space=vmem, size = 0x12000, scoped, tag = 'internal scratch']
  #allocation2 [shape = 'f32[18,32,48]{2,1,0:T(8,128)}', space=vmem, size = 0x48000, scoped, tag = 'scratch operand']
  %s0 = inlined_call_operand.vmem [shape: f32[2,256,8], index: 0, kind: input, shape index: {}]
  %s1 = inlined_call_operand.vmem [shape: f32[8,48], index: 1, kind: input, shape index: {}]
  %s2 = inlined_call_operand.vmem [shape: f32[1,48], index: 2, kind: input, shape index: {}]
  %s3 = inlined_call_operand.vmem [shape: f32[3,3,48], index: 3, kind: input, shape index: {}]
  %s4 = inlined_call_operand.vmem [shape: f32[1,48], index: 4, kind: input, shape index: {}]
  %s5 = inlined_call_operand.vmem [shape: f32[48,8], index: 5, kind: input, shape index: {}]
  %s6 = inlined_call_operand.vmem [shape: f32[1,8], index: 6, kind: input, shape index: {}]
  %s7 = inlined_call_operand.vmem [shape: f32[2,256,8], index: 7, kind: output, shape index: {}]
  %s8 = sld [smem:[#allocation0]]
  $region61: #{tpu_custom_call.1} parent=0
    _
  %s10 = ssub.s32 1, %s8
  %s11 = scalar_select 0, %s10, %s8
  loop: start=0, step=1, limit=4
  $region2: #{tpu_custom_call.1} parent=0 // loop_pre_header
    _
  $region3: #{tpu_custom_call.1} parent=0 // loop_header
    %s13 = sphi 0, %s17
    %p14 = scmp.ge.s32.totalorder %s13, 4
    %s23 = sphi 0, %s25
    %s26 = sphi 0, %s23
    %s27 = sphi 0, %s26
    %s43 = sphi 0, %s27
    %s47 = sphi 0, %s47
    %s49 = sphi 0, %s47
    %s50 = sphi 0, %s49
    %s64 = sphi 0, %s50
    %s68 = sphi 0, %s68
    %s70 = sphi 0, %s68
    %s71 = sphi 0, %s70
    %s85 = sphi 0, %s71
    %s89 = sphi 0, %s89
    %s91 = sphi 0, %s89
    %s92 = sphi 0, %s91
    %s106 = sphi 0, %s92
    %s110 = sphi 0, %s110
    %s112 = sphi 0, %s110
    %s113 = sphi 0, %s112
    %s127 = sphi 0, %s113
    %s131 = sphi 0, %s131
    %s133 = sphi 0, %s131
    %s134 = sphi 0, %s133
    %s148 = sphi 0, %s134
    %s152 = sphi 0, %s152
    %s154 = sphi 0, %s152
    %s155 = sphi 0, %s154
    %s169 = sphi 0, %s155
    %s175 = sphi 0, %s177
    %s178 = sphi 0, %s175
    %s179 = sphi 0, %s178
    %s195 = sphi 0, %s179
  $region4: #{tpu_custom_call.1} parent=0 // loop_header_branch
    %16 = sbr.rel (%p14) target = $region8
  $region5: #{tpu_custom_call.1} parent=0 // loop_body
    %s18 = ssub.s32 %s13, 1
    %s19 = ssub.s32 %s13, 2
    %s20 = sadd.s32 %s13, 1
    %s21 = ssub.s32 %s13, %s20
    %p22 = scmp.eq.s32.totalorder %s21, 0
    %s24 = sadd.s32 %s23, 1
    %s25 = scalar_select %p22, %s23, %s24
    %p28 = pneg %p22
    %p29 = scmp.eq.s32.totalorder %s13, 1
    %p30 = por %p28, %p29
    %p31 = scmp.ne.s32.totalorder %s23, %s26
    %p32 = scmp.eq.s32.totalorder %s13, 0
    %p33 = por %p31, %p32
    %p34 = scmp.ne.s32.totalorder %s23, %s26
    %p35 = scmp.eq.s32.totalorder %s18, 1
    %p36 = por %p34, %p35
    %p37 = scmp.ne.s32.totalorder %s26, %s27
    %p38 = scmp.eq.s32.totalorder %s18, 0
    %p39 = por %p37, %p38
    %p40 = scmp.ne.s32.totalorder %s26, %s27
    %p41 = scmp.eq.s32.totalorder %s19, 1
    %p42 = por %p40, %p41
    %p44 = scmp.ne.s32.totalorder %s27, %s43
    %p45 = scmp.eq.s32.totalorder %s19, 0
    %p46 = por %p44, %p45
    %s48 = sadd.s32 %s47, 1
    %p51 = scmp.eq.s32.totalorder %s13, 1
    %p52 = scmp.ne.s32.totalorder %s47, %s49
    %p53 = scmp.eq.s32.totalorder %s13, 0
    %p54 = por %p52, %p53
    %p55 = scmp.ne.s32.totalorder %s47, %s49
    %p56 = scmp.eq.s32.totalorder %s18, 1
    %p57 = por %p55, %p56
    %p58 = scmp.ne.s32.totalorder %s49, %s50
    %p59 = scmp.eq.s32.totalorder %s18, 0
    %p60 = por %p58, %p59
    %p61 = scmp.ne.s32.totalorder %s49, %s50
    %p62 = scmp.eq.s32.totalorder %s19, 1
    %p63 = por %p61, %p62
    %p65 = scmp.ne.s32.totalorder %s50, %s64
    %p66 = scmp.eq.s32.totalorder %s19, 0
    %p67 = por %p65, %p66
    %s69 = sadd.s32 %s68, 1
    %p72 = scmp.eq.s32.totalorder %s13, 1
    %p73 = scmp.ne.s32.totalorder %s68, %s70
    %p74 = scmp.eq.s32.totalorder %s13, 0
    %p75 = por %p73, %p74
    %p76 = scmp.ne.s32.totalorder %s68, %s70
    %p77 = scmp.eq.s32.totalorder %s18, 1
    %p78 = por %p76, %p77
    %p79 = scmp.ne.s32.totalorder %s70, %s71
    %p80 = scmp.eq.s32.totalorder %s18, 0
    %p81 = por %p79, %p80
    %p82 = scmp.ne.s32.totalorder %s70, %s71
    %p83 = scmp.eq.s32.totalorder %s19, 1
    %p84 = por %p82, %p83
    %p86 = scmp.ne.s32.totalorder %s71, %s85
    %p87 = scmp.eq.s32.totalorder %s19, 0
    %p88 = por %p86, %p87
    %s90 = sadd.s32 %s89, 1
    %p93 = scmp.eq.s32.totalorder %s13, 1
    %p94 = scmp.ne.s32.totalorder %s89, %s91
    %p95 = scmp.eq.s32.totalorder %s13, 0
    %p96 = por %p94, %p95
    %p97 = scmp.ne.s32.totalorder %s89, %s91
    %p98 = scmp.eq.s32.totalorder %s18, 1
    %p99 = por %p97, %p98
    %p100 = scmp.ne.s32.totalorder %s91, %s92
    %p101 = scmp.eq.s32.totalorder %s18, 0
    %p102 = por %p100, %p101
    %p103 = scmp.ne.s32.totalorder %s91, %s92
    %p104 = scmp.eq.s32.totalorder %s19, 1
    %p105 = por %p103, %p104
    %p107 = scmp.ne.s32.totalorder %s92, %s106
    %p108 = scmp.eq.s32.totalorder %s19, 0
    %p109 = por %p107, %p108
    %s111 = sadd.s32 %s110, 1
    %p114 = scmp.eq.s32.totalorder %s13, 1
    %p115 = scmp.ne.s32.totalorder %s110, %s112
    %p116 = scmp.eq.s32.totalorder %s13, 0
    %p117 = por %p115, %p116
    %p118 = scmp.ne.s32.totalorder %s110, %s112
    %p119 = scmp.eq.s32.totalorder %s18, 1
    %p120 = por %p118, %p119
    %p121 = scmp.ne.s32.totalorder %s112, %s113
    %p122 = scmp.eq.s32.totalorder %s18, 0
    %p123 = por %p121, %p122
    %p124 = scmp.ne.s32.totalorder %s112, %s113
    %p125 = scmp.eq.s32.totalorder %s19, 1
    %p126 = por %p124, %p125
    %p128 = scmp.ne.s32.totalorder %s113, %s127
    %p129 = scmp.eq.s32.totalorder %s19, 0
    %p130 = por %p128, %p129
    %s132 = sadd.s32 %s131, 1
    %p135 = scmp.eq.s32.totalorder %s13, 1
    %p136 = scmp.ne.s32.totalorder %s131, %s133
    %p137 = scmp.eq.s32.totalorder %s13, 0
    %p138 = por %p136, %p137
    %p139 = scmp.ne.s32.totalorder %s131, %s133
    %p140 = scmp.eq.s32.totalorder %s18, 1
    %p141 = por %p139, %p140
    %p142 = scmp.ne.s32.totalorder %s133, %s134
    %p143 = scmp.eq.s32.totalorder %s18, 0
    %p144 = por %p142, %p143
    %p145 = scmp.ne.s32.totalorder %s133, %s134
    %p146 = scmp.eq.s32.totalorder %s19, 1
    %p147 = por %p145, %p146
    %p149 = scmp.ne.s32.totalorder %s134, %s148
    %p150 = scmp.eq.s32.totalorder %s19, 0
    %p151 = por %p149, %p150
    %s153 = sadd.s32 %s152, 1
    %p156 = scmp.eq.s32.totalorder %s13, 1
    %p157 = scmp.ne.s32.totalorder %s152, %s154
    %p158 = scmp.eq.s32.totalorder %s13, 0
    %p159 = por %p157, %p158
    %p160 = scmp.ne.s32.totalorder %s152, %s154
    %p161 = scmp.eq.s32.totalorder %s18, 1
    %p162 = por %p160, %p161
    %p163 = scmp.ne.s32.totalorder %s154, %s155
    %p164 = scmp.eq.s32.totalorder %s18, 0
    %p165 = por %p163, %p164
    %p166 = scmp.ne.s32.totalorder %s154, %s155
    %p167 = scmp.eq.s32.totalorder %s19, 1
    %p168 = por %p166, %p167
    %p170 = scmp.ne.s32.totalorder %s155, %s169
    %p171 = scmp.eq.s32.totalorder %s19, 0
    %p172 = por %p170, %p171
    %s173 = ssub.s32 %s13, %s20
    %p174 = scmp.eq.s32.totalorder %s173, 0
    %s176 = sadd.s32 %s175, 1
    %s177 = scalar_select %p174, %s175, %s176
    %p180 = pneg %p174
    %p181 = scmp.eq.s32.totalorder %s13, 1
    %p182 = por %p180, %p181
    %p183 = scmp.ne.s32.totalorder %s175, %s178
    %p184 = scmp.eq.s32.totalorder %s13, 0
    %p185 = por %p183, %p184
    %p186 = scmp.ne.s32.totalorder %s175, %s178
    %p187 = scmp.eq.s32.totalorder %s18, 1
    %p188 = por %p186, %p187
    %p189 = scmp.ne.s32.totalorder %s178, %s179
    %p190 = scmp.eq.s32.totalorder %s18, 0
    %p191 = por %p189, %p190
    %p192 = scmp.ne.s32.totalorder %s178, %s179
    %p193 = scmp.eq.s32.totalorder %s19, 1
    %p194 = por %p192, %p193
    %p196 = scmp.ne.s32.totalorder %s179, %s195
    %p197 = scmp.eq.s32.totalorder %s19, 0
    %p198 = por %p196, %p197
    %p199 = scmp.le.s32.totalorder 1, %s13
    %p200 = scmp.lt.s32.totalorder %s13, 3
    %p201 = pnand %p199, %p200
    %p202 = pneg %p201
    // Predicated region
    $region9: #{tpu_custom_call.1} parent=5 // pred_check
      _
    $region10: #{tpu_custom_call.1} parent=5 // pred_check_branch
      %204 = sbr.rel (%p201) target = $region12
    $region11: #{tpu_custom_call.1} parent=5 // pred_region
      %s205 = ssub.s32 %s13, 1
      // Predicated region
      $region13: #{tpu_custom_call.1} parent=11 // pred_check
        %p206 = pneg %p60
      $region14: #{tpu_custom_call.1} parent=11 // pred_check_branch
        %208 = sbr.rel (%p206) target = $region16
      $region15: #{tpu_custom_call.1} parent=11 // pred_region
        _
      $region16: #{tpu_custom_call.1} parent=11 // pred_fallthru
        _
      // Predicated region
      $region17: #{tpu_custom_call.1} parent=11 // pred_check
        %p209 = pneg %p81
      $region18: #{tpu_custom_call.1} parent=11 // pred_check_branch
        %211 = sbr.rel (%p209) target = $region20
      $region19: #{tpu_custom_call.1} parent=11 // pred_region
        _
      $region20: #{tpu_custom_call.1} parent=11 // pred_fallthru
        _
      // Predicated region
      $region21: #{tpu_custom_call.1} parent=11 // pred_check
        %p212 = pneg %p102
      $region22: #{tpu_custom_call.1} parent=11 // pred_check_branch
        %214 = sbr.rel (%p212) target = $region24
      $region23: #{tpu_custom_call.1} parent=11 // pred_region
        _
      $region24: #{tpu_custom_call.1} parent=11 // pred_fallthru
        _
      // Predicated region
      $region25: #{tpu_custom_call.1} parent=11 // pred_check
        %p215 = pneg %p123
      $region26: #{tpu_custom_call.1} parent=11 // pred_check_branch
        %217 = sbr.rel (%p215) target = $region28
      $region27: #{tpu_custom_call.1} parent=11 // pred_region
        _
      $region28: #{tpu_custom_call.1} parent=11 // pred_fallthru
        _
      // Predicated region
      $region29: #{tpu_custom_call.1} parent=11 // pred_check
        %p218 = pneg %p144
      $region30: #{tpu_custom_call.1} parent=11 // pred_check_branch
        %220 = sbr.rel (%p218) target = $region32
      $region31: #{tpu_custom_call.1} parent=11 // pred_region
        _
      $region32: #{tpu_custom_call.1} parent=11 // pred_fallthru
        _
      // Predicated region
      $region33: #{tpu_custom_call.1} parent=11 // pred_check
        %p221 = pneg %p165
      $region34: #{tpu_custom_call.1} parent=11 // pred_check_branch
        %223 = sbr.rel (%p221) target = $region36
      $region35: #{tpu_custom_call.1} parent=11 // pred_region
        _
      $region36: #{tpu_custom_call.1} parent=11 // pred_fallthru
        _
    $region12: #{tpu_custom_call.1} parent=5 // pred_fallthru
      _
    %p224 = scmp.lt.s32.totalorder %s13, 2
    // Predicated region
    $region37: #{tpu_custom_call.1} parent=5 // pred_check
      %p225 = pneg %p224
    $region38: #{tpu_custom_call.1} parent=5 // pred_check_branch
      %227 = sbr.rel (%p225) target = $region40
    $region39: #{tpu_custom_call.1} parent=5 // pred_region
      // Predicated region
      $region41: #{tpu_custom_call.1} parent=39 // pred_check
        %p228 = pneg %p33
      $region42: #{tpu_custom_call.1} parent=39 // pred_check_branch
        %230 = sbr.rel (%p228) target = $region44
      $region43: #{tpu_custom_call.1} parent=39 // pred_region
        %p231 = scmp.lt.s32.totalorder %s13, 1
        %s232 = scalar_select %p231, %s13, 1
        %s233 = smul.addr %s232, 32
        %s234 = smul.addr %s233, 8
        %s235 = scalar_lea.vmem %s0, %s234
      $region44: #{tpu_custom_call.1} parent=39 // pred_fallthru
        _
    $region40: #{tpu_custom_call.1} parent=5 // pred_fallthru
      _
    %p236 = scmp.le.s32.totalorder 1, %s13
    %p237 = scmp.lt.s32.totalorder %s13, 3
    %p238 = pnand %p236, %p237
    %p239 = pneg %p238
    // Predicated region
    $region45: #{tpu_custom_call.1} parent=5 // pred_check
      _
    $region46: #{tpu_custom_call.1} parent=5 // pred_check_branch
      %241 = sbr.rel (%p238) target = $region48
    $region47: #{tpu_custom_call.1} parent=5 // pred_region
      %s242 = ssub.s32 %s13, 1
      %p243 = scmp.lt.s32.totalorder %s18, 1
      %s244 = scalar_select %p243, %s18, 1
      %s245 = smul.addr %s244, 32
      %s246 = smul.addr %s245, 8
      %s247 = scalar_lea.vmem %s0, %s246
      %p248 = pneg %p39
      %p249 = pneg %p36
      %p250 = pneg %p60
      %p251 = pneg %p57
      %p252 = pneg %p81
      %p253 = pneg %p78
      %p254 = pneg %p102
      %p255 = pneg %p99
      %p256 = pneg %p123
      %p257 = pneg %p120
      %p258 = pneg %p144
      %p259 = pneg %p141
      %p260 = pneg %p165
      %p261 = pneg %p162
      %p262 = pneg %p191
      %p263 = pneg %p188
      %p264 = scmp.lt.s32.totalorder %s18, 1
      %s265 = scalar_select %p264, %s18, 1
      %s266 = smul.addr %s265, 32
      %s267 = smul.addr %s266, 8
      %s268 = scalar_lea.vmem %s7, %s267
      %p269 = scmp.lt.s32.totalorder %s18, 1
      %s270 = scalar_select %p269, %s18, 1
      %s271 = smul.addr %s270, 32
      %s272 = smul.addr %s271, 8
      %s273 = scalar_lea.vmem %s0, %s272
      %p274 = scmp.lt.s32.totalorder %s18, 1
      %s275 = scalar_select %p274, %s18, 1
      %s276 = smul.addr %s275, 32
      %s277 = smul.addr %s276, 8
      %s278 = scalar_lea.vmem %s7, %s277
      %v279 = vld [vmem:[%s273] sm:$0xff]
      %v280 = vld [vmem:[%s273 + $0x8] sm:$0xff]
      %v281 = vld [vmem:[%s273 + $0x10] sm:$0xff]
      %v282 = vld [vmem:[%s273 + $0x18] sm:$0xff]
      %v283 = vld [vmem:[%s273 + $0x20] sm:$0xff]
      %v284 = vld [vmem:[%s273 + $0x28] sm:$0xff]
      %v285 = vld [vmem:[%s273 + $0x30] sm:$0xff]
      %v286 = vld [vmem:[%s273 + $0x38] sm:$0xff]
      %v287 = vld [vmem:[%s273 + $0x40] sm:$0xff]
      %v288 = vld [vmem:[%s273 + $0x48] sm:$0xff]
      %v289 = vld [vmem:[%s273 + $0x50] sm:$0xff]
      %v290 = vld [vmem:[%s273 + $0x58] sm:$0xff]
      %v291 = vld [vmem:[%s273 + $0x60] sm:$0xff]
      %v292 = vld [vmem:[%s273 + $0x68] sm:$0xff]
      %v293 = vld [vmem:[%s273 + $0x70] sm:$0xff]
      %v294 = vld [vmem:[%s273 + $0x78] sm:$0xff]
      %v295 = vld [vmem:[%s273 + $0x80] sm:$0xff]
      %v296 = vld [vmem:[%s273 + $0x88] sm:$0xff]
      %v297 = vld [vmem:[%s273 + $0x90] sm:$0xff]
      %v298 = vld [vmem:[%s273 + $0x98] sm:$0xff]
      %v299 = vld [vmem:[%s273 + $0xa0] sm:$0xff]
      %v300 = vld [vmem:[%s273 + $0xa8] sm:$0xff]
      %v301 = vld [vmem:[%s273 + $0xb0] sm:$0xff]
      %v302 = vld [vmem:[%s273 + $0xb8] sm:$0xff]
      %v303 = vld [vmem:[%s273 + $0xc0] sm:$0xff]
      %v304 = vld [vmem:[%s273 + $0xc8] sm:$0xff]
      %v305 = vld [vmem:[%s273 + $0xd0] sm:$0xff]
      %v306 = vld [vmem:[%s273 + $0xd8] sm:$0xff]
      %v307 = vld [vmem:[%s273 + $0xe0] sm:$0xff]
      %v308 = vld [vmem:[%s273 + $0xe8] sm:$0xff]
      %v309 = vld [vmem:[%s273 + $0xf0] sm:$0xff]
      %v310 = vld [vmem:[%s273 + $0xf8] sm:$0xff]
      %v311 = vld [vmem:[%s1] sm:$0xff]
      %v312 = vld [vmem:[%s2] sm:$0x1]
      %v314 = vlaneseq
      %v315 = vshrl.u32 %v314, 7
      %v316 = vsub.s32 0, %v315
      %v317 = vrot.slane %v312, %v316
      %vm319 = vcmask 64512
      %v321 = vsel %vm319, %v279, 0
      %v324 = vsel %vm319, %v280, 0
      %v327 = vsel %vm319, %v281, 0
      %v330 = vsel %vm319, %v282, 0
      %v333 = vsel %vm319, %v283, 0
      %v336 = vsel %vm319, %v284, 0
      %v339 = vsel %vm319, %v285, 0
      %v342 = vsel %vm319, %v286, 0
      %v345 = vsel %vm319, %v287, 0
      %v348 = vsel %vm319, %v288, 0
      %v351 = vsel %vm319, %v289, 0
      %v354 = vsel %vm319, %v290, 0
      %v357 = vsel %vm319, %v291, 0
      %v360 = vsel %vm319, %v292, 0
      %v363 = vsel %vm319, %v293, 0
      %v366 = vsel %vm319, %v294, 0
      %v369 = vsel %vm319, %v295, 0
      %v372 = vsel %vm319, %v296, 0
      %v375 = vsel %vm319, %v297, 0
      %v378 = vsel %vm319, %v298, 0
      %v381 = vsel %vm319, %v299, 0
      %v384 = vsel %vm319, %v300, 0
      %v387 = vsel %vm319, %v301, 0
      %v390 = vsel %vm319, %v302, 0
      %v393 = vsel %vm319, %v303, 0
      %v396 = vsel %vm319, %v304, 0
      %v399 = vsel %vm319, %v305, 0
      %v402 = vsel %vm319, %v306, 0
      %v405 = vsel %vm319, %v307, 0
      %v408 = vsel %vm319, %v308, 0
      %v411 = vsel %vm319, %v309, 0
      %v414 = vsel %vm319, %v310, 0
      %416 = vmatprep.subr.mxu0 0.0
      %417 = vmatpush1.msra.mxu0 %v311
      %418 = vmatprep.subr.mxu0 0.0
      %419 = vmatpush1.msra.mxu0 0.0
      %420 = vmatprep.subr.mxu0 0.0
      %421 = vmatpush1.msra.mxu0 0.0
      %422 = vmatprep.subr.mxu0 0.0
      %423 = vmatpush1.msra.mxu0 0.0
      %424 = vmatprep.subr.mxu0 0.0
      %425 = vmatpush1.msra.mxu0 0.0
      %426 = vmatprep.subr.mxu0 0.0
      %427 = vmatpush1.msra.mxu0 0.0
      %428 = vmatprep.subr.mxu0 0.0
      %429 = vmatpush1.msra.mxu0 0.0
      %430 = vmatprep.subr.mxu0 0.0
      %431 = vmatpush1.msra.mxu0 0.0
      %432 = vmatprep.subr.mxu0 0.0
      %433 = vmatpush1.msra.mxu0 0.0
      %434 = vmatprep.subr.mxu0 0.0
      %435 = vmatpush1.msra.mxu0 0.0
      %436 = vmatprep.subr.mxu0 0.0
      %437 = vmatpush1.msra.mxu0 0.0
      %438 = vmatprep.subr.mxu0 0.0
      %439 = vmatpush1.msra.mxu0 0.0
      %440 = vmatprep.subr.mxu0 0.0
      %441 = vmatpush1.msra.mxu0 0.0
      %442 = vmatprep.subr.mxu0 0.0
      %443 = vmatpush1.msra.mxu0 0.0
      %444 = vmatprep.subr.mxu0 0.0
      %445 = vmatpush1.msra.mxu0 0.0
      %446 = vmatprep.subr.mxu0 0.0
      %447 = vmatpush1.msra.mxu0 0.0
      %448 = vmatprep.subr.mxu0 0.0
      %449 = vmatpush1.msra.mxu0 0.0
      %450 = vmatprep.subr.mxu0 0.0
      %451 = vmatpush1.msra.mxu0 0.0
      %452 = vmatprep.subr.mxu0 0.0
      %453 = vmatpush1.msra.mxu0 0.0
      %454 = vmatprep.subr.mxu0 0.0
      %455 = vmatpush1.msra.mxu0 0.0
      %456 = vmatprep.subr.mxu0 0.0
      %457 = vmatpush1.msra.mxu0 0.0
      %458 = vmatprep.subr.mxu0 0.0
      %459 = vmatpush1.msra.mxu0 0.0
      %460 = vmatprep.subr.mxu0 0.0
      %461 = vmatpush1.msra.mxu0 0.0
      %462 = vmatprep.subr.mxu0 0.0
      %463 = vmatpush1.msra.mxu0 0.0
      %464 = vmatprep.subr.mxu0 0.0
      %465 = vmatpush1.msra.mxu0 0.0
      %466 = vmatprep.subr.mxu0 0.0
      %467 = vmatpush1.msra.mxu0 0.0
      %468 = vmatprep.subr.mxu0 0.0
      %469 = vmatpush1.msra.mxu0 0.0
      %470 = vmatprep.subr.mxu0 0.0
      %471 = vmatpush1.msra.mxu0 0.0
      %472 = vmatprep.subr.mxu0 0.0
      %473 = vmatpush1.msra.mxu0 0.0
      %474 = vmatprep.subr.mxu0 0.0
      %475 = vmatpush1.msra.mxu0 0.0
      %476 = vmatprep.subr.mxu0 0.0
      %477 = vmatpush1.msra.mxu0 0.0
      %478 = vmatprep.subr.mxu0 0.0
      %479 = vmatpush1.msra.mxu0 0.0
      %480 = vmatprep.mubr.f32.mxu0 0.0
      %481 = vmatmul.mubr.f32.gmra.mrb[0].mxu0 %v321
      %v482 = vpop.f32.mrb[0].mxu0
      %v483 = vadd.f32 %v317, %v482
      %v484 = vpop.f32.mrb[0].mxu0
      %485 = vmatprep.mubr.f32.mxu0 0.0
      %486 = vmatmul.mubr.f32.gmra.mrb[0].mxu0 %v324
      %v487 = vpop.f32.mrb[0].mxu0
      %v488 = vadd.f32 %v317, %v487
      %v489 = vpop.f32.mrb[0].mxu0
      %490 = vmatprep.mubr.f32.mxu0 0.0
      %491 = vmatmul.mubr.f32.gmra.mrb[0].mxu0 %v327
      %v492 = vpop.f32.mrb[0].mxu0
      %v493 = vadd.f32 %v317, %v492
      %v494 = vpop.f32.mrb[0].mxu0
      %495 = vmatprep.mubr.f32.mxu0 0.0
      %496 = vmatmul.mubr.f32.gmra.mrb[0].mxu0 %v330
      %v497 = vpop.f32.mrb[0].mxu0
      %v498 = vadd.f32 %v317, %v497
      %v499 = vpop.f32.mrb[0].mxu0
      %500 = vmatprep.mubr.f32.mxu0 0.0
      %501 = vmatmul.mubr.f32.gmra.mrb[0].mxu0 %v333
      %v502 = vpop.f32.mrb[0].mxu0
      %v503 = vadd.f32 %v317, %v502
      %v504 = vpop.f32.mrb[0].mxu0
      %505 = vmatprep.mubr.f32.mxu0 0.0
      %506 = vmatmul.mubr.f32.gmra.mrb[0].mxu0 %v336
      %v507 = vpop.f32.mrb[0].mxu0
      %v508 = vadd.f32 %v317, %v507
      %v509 = vpop.f32.mrb[0].mxu0
      %510 = vmatprep.mubr.f32.mxu0 0.0
      %511 = vmatmul.mubr.f32.gmra.mrb[0].mxu0 %v339
      %v512 = vpop.f32.mrb[0].mxu0
      %v513 = vadd.f32 %v317, %v512
      %v514 = vpop.f32.mrb[0].mxu0
      %515 = vmatprep.mubr.f32.mxu0 0.0
      %516 = vmatmul.mubr.f32.gmra.mrb[0].mxu0 %v342
      %v517 = vpop.f32.mrb[0].mxu0
      %v518 = vadd.f32 %v317, %v517
      %v519 = vpop.f32.mrb[0].mxu0
      %520 = vmatprep.mubr.f32.mxu0 0.0
      %521 = vmatmul.mubr.f32.gmra.mrb[0].mxu0 %v345
      %v522 = vpop.f32.mrb[0].mxu0
      %v523 = vadd.f32 %v317, %v522
      %v524 = vpop.f32.mrb[0].mxu0
      %525 = vmatprep.mubr.f32.mxu0 0.0
      %526 = vmatmul.mubr.f32.gmra.mrb[0].mxu0 %v348
      %v527 = vpop.f32.mrb[0].mxu0
      %v528 = vadd.f32 %v317, %v527
      %v529 = vpop.f32.mrb[0].mxu0
      %530 = vmatprep.mubr.f32.mxu0 0.0
      %531 = vmatmul.mubr.f32.gmra.mrb[0].mxu0 %v351
      %v532 = vpop.f32.mrb[0].mxu0
      %v533 = vadd.f32 %v317, %v532
      %v534 = vpop.f32.mrb[0].mxu0
      %535 = vmatprep.mubr.f32.mxu0 0.0
      %536 = vmatmul.mubr.f32.gmra.mrb[0].mxu0 %v354
      %v537 = vpop.f32.mrb[0].mxu0
      %v538 = vadd.f32 %v317, %v537
      %v539 = vpop.f32.mrb[0].mxu0
      %540 = vmatprep.mubr.f32.mxu0 0.0
      %541 = vmatmul.mubr.f32.gmra.mrb[0].mxu0 %v357
      %v542 = vpop.f32.mrb[0].mxu0
      %v543 = vadd.f32 %v317, %v542
      %v544 = vpop.f32.mrb[0].mxu0
      %545 = vmatprep.mubr.f32.mxu0 0.0
      %546 = vmatmul.mubr.f32.gmra.mrb[0].mxu0 %v360
      %v547 = vpop.f32.mrb[0].mxu0
      %v548 = vadd.f32 %v317, %v547
      %v549 = vpop.f32.mrb[0].mxu0
      %550 = vmatprep.mubr.f32.mxu0 0.0
      %551 = vmatmul.mubr.f32.gmra.mrb[0].mxu0 %v363
      %v552 = vpop.f32.mrb[0].mxu0
      %v553 = vadd.f32 %v317, %v552
      %v554 = vpop.f32.mrb[0].mxu0
      %555 = vmatprep.mubr.f32.mxu0 0.0
      %556 = vmatmul.mubr.f32.gmra.mrb[0].mxu0 %v366
      %v557 = vpop.f32.mrb[0].mxu0
      %v558 = vadd.f32 %v317, %v557
      %v559 = vpop.f32.mrb[0].mxu0
      %560 = vmatprep.mubr.f32.mxu0 0.0
      %561 = vmatmul.mubr.f32.gmra.mrb[0].mxu0 %v369
      %v562 = vpop.f32.mrb[0].mxu0
      %v563 = vadd.f32 %v317, %v562
      %v564 = vpop.f32.mrb[0].mxu0
      %565 = vmatprep.mubr.f32.mxu0 0.0
      %566 = vmatmul.mubr.f32.gmra.mrb[0].mxu0 %v372
      %v567 = vpop.f32.mrb[0].mxu0
      %v568 = vadd.f32 %v317, %v567
      %v569 = vpop.f32.mrb[0].mxu0
      %570 = vmatprep.mubr.f32.mxu0 0.0
      %571 = vmatmul.mubr.f32.gmra.mrb[0].mxu0 %v375
      %v572 = vpop.f32.mrb[0].mxu0
      %v573 = vadd.f32 %v317, %v572
      %v574 = vpop.f32.mrb[0].mxu0
      %575 = vmatprep.mubr.f32.mxu0 0.0
      %576 = vmatmul.mubr.f32.gmra.mrb[0].mxu0 %v378
      %v577 = vpop.f32.mrb[0].mxu0
      %v578 = vadd.f32 %v317, %v577
      %v579 = vpop.f32.mrb[0].mxu0
      %580 = vmatprep.mubr.f32.mxu0 0.0
      %581 = vmatmul.mubr.f32.gmra.mrb[0].mxu0 %v381
      %v582 = vpop.f32.mrb[0].mxu0
      %v583 = vadd.f32 %v317, %v582
      %v584 = vpop.f32.mrb[0].mxu0
      %585 = vmatprep.mubr.f32.mxu0 0.0
      %586 = vmatmul.mubr.f32.gmra.mrb[0].mxu0 %v384
      %v587 = vpop.f32.mrb[0].mxu0
      %v588 = vadd.f32 %v317, %v587
      %v589 = vpop.f32.mrb[0].mxu0
      %590 = vmatprep.mubr.f32.mxu0 0.0
      %591 = vmatmul.mubr.f32.gmra.mrb[0].mxu0 %v387
      %v592 = vpop.f32.mrb[0].mxu0
      %v593 = vadd.f32 %v317, %v592
      %v594 = vpop.f32.mrb[0].mxu0
      %595 = vmatprep.mubr.f32.mxu0 0.0
      %596 = vmatmul.mubr.f32.gmra.mrb[0].mxu0 %v390
      %v597 = vpop.f32.mrb[0].mxu0
      %v598 = vadd.f32 %v317, %v597
      %v599 = vpop.f32.mrb[0].mxu0
      %600 = vmatprep.mubr.f32.mxu0 0.0
      %601 = vmatmul.mubr.f32.gmra.mrb[0].mxu0 %v393
      %v602 = vpop.f32.mrb[0].mxu0
      %v603 = vadd.f32 %v317, %v602
      %v604 = vpop.f32.mrb[0].mxu0
      %605 = vmatprep.mubr.f32.mxu0 0.0
      %606 = vmatmul.mubr.f32.gmra.mrb[0].mxu0 %v396
      %v607 = vpop.f32.mrb[0].mxu0
      %v608 = vadd.f32 %v317, %v607
      %v609 = vpop.f32.mrb[0].mxu0
      %610 = vmatprep.mubr.f32.mxu0 0.0
      %611 = vmatmul.mubr.f32.gmra.mrb[0].mxu0 %v399
      %v612 = vpop.f32.mrb[0].mxu0
      %v613 = vadd.f32 %v317, %v612
      %v614 = vpop.f32.mrb[0].mxu0
      %615 = vmatprep.mubr.f32.mxu0 0.0
      %616 = vmatmul.mubr.f32.gmra.mrb[0].mxu0 %v402
      %v617 = vpop.f32.mrb[0].mxu0
      %v618 = vadd.f32 %v317, %v617
      %v619 = vpop.f32.mrb[0].mxu0
      %620 = vmatprep.mubr.f32.mxu0 0.0
      %621 = vmatmul.mubr.f32.gmra.mrb[0].mxu0 %v405
      %v622 = vpop.f32.mrb[0].mxu0
      %v623 = vadd.f32 %v317, %v622
      %v624 = vpop.f32.mrb[0].mxu0
      %625 = vmatprep.mubr.f32.mxu0 0.0
      %626 = vmatmul.mubr.f32.gmra.mrb[0].mxu0 %v408
      %v627 = vpop.f32.mrb[0].mxu0
      %v628 = vadd.f32 %v317, %v627
      %v629 = vpop.f32.mrb[0].mxu0
      %630 = vmatprep.mubr.f32.mxu0 0.0
      %631 = vmatmul.mubr.f32.gmra.mrb[0].mxu0 %v411
      %v632 = vpop.f32.mrb[0].mxu0
      %v633 = vadd.f32 %v317, %v632
      %v634 = vpop.f32.mrb[0].mxu0
      %635 = vmatprep.mubr.f32.mxu0 0.0
      %636 = vmatmul.mubr.f32.gmra.mrb[0].mxu0 %v414
      %v637 = vpop.f32.mrb[0].mxu0
      %v638 = vadd.f32 %v317, %v637
      %v639 = vpop.f32.mrb[0].mxu0
      %640 = vdwg.mxu0
      %v641 = vmax.f32 %v483, 0.0
      %v642 = vmax.f32 %v488, 0.0
      %v643 = vmax.f32 %v493, 0.0
      %v644 = vmax.f32 %v498, 0.0
      %v645 = vmax.f32 %v503, 0.0
      %v646 = vmax.f32 %v508, 0.0
      %v647 = vmax.f32 %v513, 0.0
      %v648 = vmax.f32 %v518, 0.0
      %v649 = vmax.f32 %v523, 0.0
      %v650 = vmax.f32 %v528, 0.0
      %v651 = vmax.f32 %v533, 0.0
      %v652 = vmax.f32 %v538, 0.0
      %v653 = vmax.f32 %v543, 0.0
      %v654 = vmax.f32 %v548, 0.0
      %v655 = vmax.f32 %v553, 0.0
      %v656 = vmax.f32 %v558, 0.0
      %v657 = vmax.f32 %v563, 0.0
      %v658 = vmax.f32 %v568, 0.0
      %v659 = vmax.f32 %v573, 0.0
      %v660 = vmax.f32 %v578, 0.0
      %v661 = vmax.f32 %v583, 0.0
      %v662 = vmax.f32 %v588, 0.0
      %v663 = vmax.f32 %v593, 0.0
      %v664 = vmax.f32 %v598, 0.0
      %v665 = vmax.f32 %v603, 0.0
      %v666 = vmax.f32 %v608, 0.0
      %v667 = vmax.f32 %v613, 0.0
      %v668 = vmax.f32 %v618, 0.0
      %v669 = vmax.f32 %v623, 0.0
      %v670 = vmax.f32 %v628, 0.0
      %v671 = vmax.f32 %v633, 0.0
      %v672 = vmax.f32 %v638, 0.0
      %v673 = vmin.f32 %v641, 6.0
      %v674 = vmin.f32 %v642, 6.0
      %v675 = vmin.f32 %v643, 6.0
      %v676 = vmin.f32 %v644, 6.0
      %v677 = vmin.f32 %v645, 6.0
      %v678 = vmin.f32 %v646, 6.0
      %v679 = vmin.f32 %v647, 6.0
      %v680 = vmin.f32 %v648, 6.0
      %v681 = vmin.f32 %v649, 6.0
      %v682 = vmin.f32 %v650, 6.0
      %v683 = vmin.f32 %v651, 6.0
      %v684 = vmin.f32 %v652, 6.0
      %v685 = vmin.f32 %v653, 6.0
      %v686 = vmin.f32 %v654, 6.0
      %v687 = vmin.f32 %v655, 6.0
      %v688 = vmin.f32 %v656, 6.0
      %v689 = vmin.f32 %v657, 6.0
      %v690 = vmin.f32 %v658, 6.0
      %v691 = vmin.f32 %v659, 6.0
      %v692 = vmin.f32 %v660, 6.0
      %v693 = vmin.f32 %v661, 6.0
      %v694 = vmin.f32 %v662, 6.0
      %v695 = vmin.f32 %v663, 6.0
      %v696 = vmin.f32 %v664, 6.0
      %v697 = vmin.f32 %v665, 6.0
      %v698 = vmin.f32 %v666, 6.0
      %v699 = vmin.f32 %v667, 6.0
      %v700 = vmin.f32 %v668, 6.0
      %v701 = vmin.f32 %v669, 6.0
      %v702 = vmin.f32 %v670, 6.0
      %v703 = vmin.f32 %v671, 6.0
      %v704 = vmin.f32 %v672, 6.0
      %vm705 = vcmask 392192
      %706 = vst.msk [vmem:[#allocation2] sm:$0xff] %vm705, 0.0
      %707 = vst.msk [vmem:[#allocation2 + $0x8] sm:$0xff] %vm705, 0.0
      %708 = vst.msk [vmem:[#allocation2 + $0x10] sm:$0xff] %vm705, 0.0
      %709 = vst.msk [vmem:[#allocation2 + $0x18] sm:$0xff] %vm705, 0.0
      %710 = vst.msk [vmem:[#allocation2 + $0x20] sm:$0xff] %vm705, 0.0
      %711 = vst.msk [vmem:[#allocation2 + $0x28] sm:$0xff] %vm705, 0.0
      %712 = vst.msk [vmem:[#allocation2 + $0x30] sm:$0xff] %vm705, 0.0
      %713 = vst.msk [vmem:[#allocation2 + $0x38] sm:$0xff] %vm705, 0.0
      %714 = vst.msk [vmem:[#allocation2 + $0x40] sm:$0xff] %vm705, 0.0
      %715 = vst.msk [vmem:[#allocation2 + $0x48] sm:$0xff] %vm705, 0.0
      %716 = vst.msk [vmem:[#allocation2 + $0x50] sm:$0xff] %vm705, 0.0
      %717 = vst.msk [vmem:[#allocation2 + $0x58] sm:$0xff] %vm705, 0.0
      %718 = vst.msk [vmem:[#allocation2 + $0x60] sm:$0xff] %vm705, 0.0
      %719 = vst.msk [vmem:[#allocation2 + $0x68] sm:$0xff] %vm705, 0.0
      %720 = vst.msk [vmem:[#allocation2 + $0x70] sm:$0xff] %vm705, 0.0
      %721 = vst.msk [vmem:[#allocation2 + $0x78] sm:$0xff] %vm705, 0.0
      %722 = vst.msk [vmem:[#allocation2 + $0x80] sm:$0xff] %vm705, 0.0
      %723 = vst.msk [vmem:[#allocation2 + $0x88] sm:$0xff] %vm705, 0.0
      %724 = vst.msk [vmem:[#allocation2 + $0x90] sm:$0xff] %vm705, 0.0
      %725 = vst.msk [vmem:[#allocation2 + $0x98] sm:$0xff] %vm705, 0.0
      %726 = vst.msk [vmem:[#allocation2 + $0xa0] sm:$0xff] %vm705, 0.0
      %727 = vst.msk [vmem:[#allocation2 + $0xa8] sm:$0xff] %vm705, 0.0
      %728 = vst.msk [vmem:[#allocation2 + $0xb0] sm:$0xff] %vm705, 0.0
      %729 = vst.msk [vmem:[#allocation2 + $0xb8] sm:$0xff] %vm705, 0.0
      %730 = vst.msk [vmem:[#allocation2 + $0xc0] sm:$0xff] %vm705, 0.0
      %731 = vst.msk [vmem:[#allocation2 + $0xc8] sm:$0xff] %vm705, 0.0
      %732 = vst.msk [vmem:[#allocation2 + $0xd0] sm:$0xff] %vm705, 0.0
      %733 = vst.msk [vmem:[#allocation2 + $0xd8] sm:$0xff] %vm705, 0.0
      %734 = vst.msk [vmem:[#allocation2 + $0xe0] sm:$0xff] %vm705, 0.0
      %735 = vst.msk [vmem:[#allocation2 + $0xe8] sm:$0xff] %vm705, 0.0
      %736 = vst.msk [vmem:[#allocation2 + $0xf0] sm:$0xff] %vm705, 0.0
      %737 = vst.msk [vmem:[#allocation2 + $0xf8] sm:$0xff] %vm705, 0.0
      %738 = vst.msk [vmem:[#allocation2 + $0x100] sm:$0xff] %vm705, 0.0
      %739 = vst.msk [vmem:[#allocation2 + $0x108] sm:$0xff] %vm705, 0.0
      %740 = vst.msk [vmem:[#allocation2 + $0x110] sm:$0xff] %vm705, 0.0
      %741 = vst.msk [vmem:[#allocation2 + $0x118] sm:$0xff] %vm705, 0.0
      %742 = vst.msk [vmem:[#allocation2 + $0x120] sm:$0xff] %vm705, 0.0
      %743 = vst.msk [vmem:[#allocation2 + $0x128] sm:$0xff] %vm705, 0.0
      %744 = vst.msk [vmem:[#allocation2 + $0x130] sm:$0xff] %vm705, 0.0
      %745 = vst.msk [vmem:[#allocation2 + $0x138] sm:$0xff] %vm705, 0.0
      %746 = vst.msk [vmem:[#allocation2 + $0x140] sm:$0xff] %vm705, 0.0
      %747 = vst.msk [vmem:[#allocation2 + $0x148] sm:$0xff] %vm705, 0.0
      %748 = vst.msk [vmem:[#allocation2 + $0x150] sm:$0xff] %vm705, 0.0
      %749 = vst.msk [vmem:[#allocation2 + $0x158] sm:$0xff] %vm705, 0.0
      %750 = vst.msk [vmem:[#allocation2 + $0x160] sm:$0xff] %vm705, 0.0
      %751 = vst.msk [vmem:[#allocation2 + $0x168] sm:$0xff] %vm705, 0.0
      %752 = vst.msk [vmem:[#allocation2 + $0x170] sm:$0xff] %vm705, 0.0
      %753 = vst.msk [vmem:[#allocation2 + $0x178] sm:$0xff] %vm705, 0.0
      %754 = vst.msk [vmem:[#allocation2 + $0x180] sm:$0xff] %vm705, 0.0
      %755 = vst.msk [vmem:[#allocation2 + $0x188] sm:$0xff] %vm705, 0.0
      %756 = vst.msk [vmem:[#allocation2 + $0x190] sm:$0xff] %vm705, 0.0
      %757 = vst.msk [vmem:[#allocation2 + $0x198] sm:$0xff] %vm705, 0.0
      %758 = vst.msk [vmem:[#allocation2 + $0x1a0] sm:$0xff] %vm705, 0.0
      %759 = vst.msk [vmem:[#allocation2 + $0x1a8] sm:$0xff] %vm705, 0.0
      %760 = vst.msk [vmem:[#allocation2 + $0x1b0] sm:$0xff] %vm705, 0.0
      %761 = vst.msk [vmem:[#allocation2 + $0x1b8] sm:$0xff] %vm705, 0.0
      %762 = vst.msk [vmem:[#allocation2 + $0x1c0] sm:$0xff] %vm705, 0.0
      %763 = vst.msk [vmem:[#allocation2 + $0x1c8] sm:$0xff] %vm705, 0.0
      %764 = vst.msk [vmem:[#allocation2 + $0x1d0] sm:$0xff] %vm705, 0.0
      %765 = vst.msk [vmem:[#allocation2 + $0x1d8] sm:$0xff] %vm705, 0.0
      %766 = vst.msk [vmem:[#allocation2 + $0x1e0] sm:$0xff] %vm705, 0.0
      %767 = vst.msk [vmem:[#allocation2 + $0x1e8] sm:$0xff] %vm705, 0.0
      %768 = vst.msk [vmem:[#allocation2 + $0x1f0] sm:$0xff] %vm705, 0.0
      %769 = vst.msk [vmem:[#allocation2 + $0x1f8] sm:$0xff] %vm705, 0.0
      %770 = vst.msk [vmem:[#allocation2 + $0x200] sm:$0xff] %vm705, 0.0
      %771 = vst.msk [vmem:[#allocation2 + $0x208] sm:$0xff] %vm705, 0.0
      %772 = vst.msk [vmem:[#allocation2 + $0x210] sm:$0xff] %vm705, 0.0
      %773 = vst.msk [vmem:[#allocation2 + $0x218] sm:$0xff] %vm705, 0.0
      %774 = vst.msk [vmem:[#allocation2 + $0x220] sm:$0xff] %vm705, 0.0
      %775 = vst.msk [vmem:[#allocation2 + $0x228] sm:$0xff] %vm705, 0.0
      %776 = vst.msk [vmem:[#allocation2 + $0x230] sm:$0xff] %vm705, 0.0
      %777 = vst.msk [vmem:[#allocation2 + $0x238] sm:$0xff] %vm705, 0.0
      %s778 = scalar_lea.vmem [#allocation2], 32
      %779 = vst.msk [vmem:[%s778 + $0x8] sm:$0xff] %vm705, %v673
      %780 = vst.msk [vmem:[%s778 + $0x10] sm:$0xff] %vm705, %v674
      %s781 = scalar_lea.vmem [#allocation2], 64
      %782 = vst.msk [vmem:[%s781 + $0x8] sm:$0xff] %vm705, %v675
      %783 = vst.msk [vmem:[%s781 + $0x10] sm:$0xff] %vm705, %v676
      %s784 = scalar_lea.vmem [#allocation2], 96
      %785 = vst.msk [vmem:[%s784 + $0x8] sm:$0xff] %vm705, %v677
      %786 = vst.msk [vmem:[%s784 + $0x10] sm:$0xff] %vm705, %v678
      %s787 = scalar_lea.vmem [#allocation2], 128
      %788 = vst.msk [vmem:[%s787 + $0x8] sm:$0xff] %vm705, %v679
      %789 = vst.msk [vmem:[%s787 + $0x10] sm:$0xff] %vm705, %v680
      %s790 = scalar_lea.vmem [#allocation2], 160
      %791 = vst.msk [vmem:[%s790 + $0x8] sm:$0xff] %vm705, %v681
      %792 = vst.msk [vmem:[%s790 + $0x10] sm:$0xff] %vm705, %v682
      %s793 = scalar_lea.vmem [#allocation2], 192
      %794 = vst.msk [vmem:[%s793 + $0x8] sm:$0xff] %vm705, %v683
      %795 = vst.msk [vmem:[%s793 + $0x10] sm:$0xff] %vm705, %v684
      %s796 = scalar_lea.vmem [#allocation2], 224
      %797 = vst.msk [vmem:[%s796 + $0x8] sm:$0xff] %vm705, %v685
      %798 = vst.msk [vmem:[%s796 + $0x10] sm:$0xff] %vm705, %v686
      %s799 = scalar_lea.vmem [#allocation2], 256
      %800 = vst.msk [vmem:[%s799 + $0x8] sm:$0xff] %vm705, %v687
      %801 = vst.msk [vmem:[%s799 + $0x10] sm:$0xff] %vm705, %v688
      %s802 = scalar_lea.vmem [#allocation2], 288
      %803 = vst.msk [vmem:[%s802 + $0x8] sm:$0xff] %vm705, %v689
      %804 = vst.msk [vmem:[%s802 + $0x10] sm:$0xff] %vm705, %v690
      %s805 = scalar_lea.vmem [#allocation2], 320
      %806 = vst.msk [vmem:[%s805 + $0x8] sm:$0xff] %vm705, %v691
      %807 = vst.msk [vmem:[%s805 + $0x10] sm:$0xff] %vm705, %v692
      %s808 = scalar_lea.vmem [#allocation2], 352
      %809 = vst.msk [vmem:[%s808 + $0x8] sm:$0xff] %vm705, %v693
      %810 = vst.msk [vmem:[%s808 + $0x10] sm:$0xff] %vm705, %v694
      %s811 = scalar_lea.vmem [#allocation2], 384
      %812 = vst.msk [vmem:[%s811 + $0x8] sm:$0xff] %vm705, %v695
      %813 = vst.msk [vmem:[%s811 + $0x10] sm:$0xff] %vm705, %v696
      %s814 = scalar_lea.vmem [#allocation2], 416
      %815 = vst.msk [vmem:[%s814 + $0x8] sm:$0xff] %vm705, %v697
      %816 = vst.msk [vmem:[%s814 + $0x10] sm:$0xff] %vm705, %v698
      %s817 = scalar_lea.vmem [#allocation2], 448
      %818 = vst.msk [vmem:[%s817 + $0x8] sm:$0xff] %vm705, %v699
      %819 = vst.msk [vmem:[%s817 + $0x10] sm:$0xff] %vm705, %v700
      %s820 = scalar_lea.vmem [#allocation2], 480
      %821 = vst.msk [vmem:[%s820 + $0x8] sm:$0xff] %vm705, %v701
      %822 = vst.msk [vmem:[%s820 + $0x10] sm:$0xff] %vm705, %v702
      %s823 = scalar_lea.vmem [#allocation2], 512
      %824 = vst.msk [vmem:[%s823 + $0x8] sm:$0xff] %vm705, %v703
      %825 = vst.msk [vmem:[%s823 + $0x10] sm:$0xff] %vm705, %v704
      %v826 = vld [vmem:[%s3] sm:$0x7]
      %v827 = vld [vmem:[%s3 + $0x4] sm:$0x7]
      %v828 = vld [vmem:[%s3 + $0x8] sm:$0x7]
      %v829 = vld [vmem:[#allocation2 + $0x7] sm:$0xff]
      %v830 = vld [vmem:[#allocation2 + $0xf] sm:$0xff]
      %v831 = vld [vmem:[#allocation2 + $0x27] sm:$0xff]
      %v832 = vld [vmem:[#allocation2 + $0x2f] sm:$0xff]
      %v833 = vld [vmem:[#allocation2 + $0x47] sm:$0xff]
      %v834 = vld [vmem:[#allocation2 + $0x4f] sm:$0xff]
      %v835 = vld [vmem:[#allocation2 + $0x67] sm:$0xff]
      %v836 = vld [vmem:[#allocation2 + $0x6f] sm:$0xff]
      %v837 = vld [vmem:[#allocation2 + $0x87] sm:$0xff]
      %v838 = vld [vmem:[#allocation2 + $0x8f] sm:$0xff]
      %v839 = vld [vmem:[#allocation2 + $0xa7] sm:$0xff]
      %v840 = vld [vmem:[#allocation2 + $0xaf] sm:$0xff]
      %v841 = vld [vmem:[#allocation2 + $0xc7] sm:$0xff]
      %v842 = vld [vmem:[#allocation2 + $0xcf] sm:$0xff]
      %v843 = vld [vmem:[#allocation2 + $0xe7] sm:$0xff]
      %v844 = vld [vmem:[#allocation2 + $0xef] sm:$0xff]
      %v845 = vld [vmem:[#allocation2 + $0x107] sm:$0xff]
      %v846 = vld [vmem:[#allocation2 + $0x10f] sm:$0xff]
      %v847 = vld [vmem:[#allocation2 + $0x127] sm:$0xff]
      %v848 = vld [vmem:[#allocation2 + $0x12f] sm:$0xff]
      %v849 = vld [vmem:[#allocation2 + $0x147] sm:$0xff]
      %v850 = vld [vmem:[#allocation2 + $0x14f] sm:$0xff]
      %v851 = vld [vmem:[#allocation2 + $0x167] sm:$0xff]
      %v852 = vld [vmem:[#allocation2 + $0x16f] sm:$0xff]
      %v853 = vld [vmem:[#allocation2 + $0x187] sm:$0xff]
      %v854 = vld [vmem:[#allocation2 + $0x18f] sm:$0xff]
      %v855 = vld [vmem:[#allocation2 + $0x1a7] sm:$0xff]
      %v856 = vld [vmem:[#allocation2 + $0x1af] sm:$0xff]
      %v857 = vld [vmem:[#allocation2 + $0x1c7] sm:$0xff]
      %v858 = vld [vmem:[#allocation2 + $0x1cf] sm:$0xff]
      %v859 = vld [vmem:[#allocation2 + $0x1e7] sm:$0xff]
      %v860 = vld [vmem:[#allocation2 + $0x1ef] sm:$0xff]
      %v861 = vld [vmem:[#allocation2 + $0x207] sm:$0xff]
      %v862 = vld [vmem:[#allocation2 + $0x20f] sm:$0xff]
      %v863 = vld [vmem:[#allocation2 + $0x227] sm:$0xff]
      %v864 = vld [vmem:[#allocation2 + $0x22f] sm:$0xff]
      %v865 = vlaneseq
      %v866 = vshrl.u32 %v865, 7
      %v867 = vsub.s32 0, %v866
      %v868 = vrot.slane %v826, %v867
      %v869 = vmul.f32 %v829, %v868
      %v870 = vmul.f32 %v830, %v868
      %v871 = vmul.f32 %v831, %v868
      %v872 = vmul.f32 %v832, %v868
      %v873 = vmul.f32 %v833, %v868
      %v874 = vmul.f32 %v834, %v868
      %v875 = vmul.f32 %v835, %v868
      %v876 = vmul.f32 %v836, %v868
      %v877 = vmul.f32 %v837, %v868
      %v878 = vmul.f32 %v838, %v868
      %v879 = vmul.f32 %v839, %v868
      %v880 = vmul.f32 %v840, %v868
      %v881 = vmul.f32 %v841, %v868
      %v882 = vmul.f32 %v842, %v868
      %v883 = vmul.f32 %v843, %v868
      %v884 = vmul.f32 %v844, %v868
      %v885 = vmul.f32 %v845, %v868
      %v886 = vmul.f32 %v846, %v868
      %v887 = vmul.f32 %v847, %v868
      %v888 = vmul.f32 %v848, %v868
      %v889 = vmul.f32 %v849, %v868
      %v890 = vmul.f32 %v850, %v868
      %v891 = vmul.f32 %v851, %v868
      %v892 = vmul.f32 %v852, %v868
      %v893 = vmul.f32 %v853, %v868
      %v894 = vmul.f32 %v854, %v868
      %v895 = vmul.f32 %v855, %v868
      %v896 = vmul.f32 %v856, %v868
      %v897 = vmul.f32 %v857, %v868
      %v898 = vmul.f32 %v858, %v868
      %v899 = vmul.f32 %v859, %v868
      %v900 = vmul.f32 %v860, %v868
      %v901 = vlaneseq
      %v902 = vshrl.u32 %v901, 7
      %v903 = vsub.s32 0, %v902
      %v904 = vrot.slane %v827, %v903
      %v905 = vmul.f32 %v831, %v904
      %v906 = vmul.f32 %v832, %v904
      %v907 = vmul.f32 %v833, %v904
      %v908 = vmul.f32 %v834, %v904
      %v909 = vmul.f32 %v835, %v904
      %v910 = vmul.f32 %v836, %v904
      %v911 = vmul.f32 %v837, %v904
      %v912 = vmul.f32 %v838, %v904
      %v913 = vmul.f32 %v839, %v904
      %v914 = vmul.f32 %v840, %v904
      %v915 = vmul.f32 %v841, %v904
      %v916 = vmul.f32 %v842, %v904
      %v917 = vmul.f32 %v843, %v904
      %v918 = vmul.f32 %v844, %v904
      %v919 = vmul.f32 %v845, %v904
      %v920 = vmul.f32 %v846, %v904
      %v921 = vmul.f32 %v847, %v904
      %v922 = vmul.f32 %v848, %v904
      %v923 = vmul.f32 %v849, %v904
      %v924 = vmul.f32 %v850, %v904
      %v925 = vmul.f32 %v851, %v904
      %v926 = vmul.f32 %v852, %v904
      %v927 = vmul.f32 %v853, %v904
      %v928 = vmul.f32 %v854, %v904
      %v929 = vmul.f32 %v855, %v904
      %v930 = vmul.f32 %v856, %v904
      %v931 = vmul.f32 %v857, %v904
      %v932 = vmul.f32 %v858, %v904
      %v933 = vmul.f32 %v859, %v904
      %v934 = vmul.f32 %v860, %v904
      %v935 = vmul.f32 %v861, %v904
      %v936 = vmul.f32 %v862, %v904
      %v937 = vadd.f32 %v869, %v905
      %v938 = vadd.f32 %v870, %v906
      %v939 = vadd.f32 %v871, %v907
      %v940 = vadd.f32 %v872, %v908
      %v941 = vadd.f32 %v873, %v909
      %v942 = vadd.f32 %v874, %v910
      %v943 = vadd.f32 %v875, %v911
      %v944 = vadd.f32 %v876, %v912
      %v945 = vadd.f32 %v877, %v913
      %v946 = vadd.f32 %v878, %v914
      %v947 = vadd.f32 %v879, %v915
      %v948 = vadd.f32 %v880, %v916
      %v949 = vadd.f32 %v881, %v917
      %v950 = vadd.f32 %v882, %v918
      %v951 = vadd.f32 %v883, %v919
      %v952 = vadd.f32 %v884, %v920
      %v953 = vadd.f32 %v885, %v921
      %v954 = vadd.f32 %v886, %v922
      %v955 = vadd.f32 %v887, %v923
      %v956 = vadd.f32 %v888, %v924
      %v957 = vadd.f32 %v889, %v925
      %v958 = vadd.f32 %v890, %v926
      %v959 = vadd.f32 %v891, %v927
      %v960 = vadd.f32 %v892, %v928
      %v961 = vadd.f32 %v893, %v929
      %v962 = vadd.f32 %v894, %v930
      %v963 = vadd.f32 %v895, %v931
      %v964 = vadd.f32 %v896, %v932
      %v965 = vadd.f32 %v897, %v933
      %v966 = vadd.f32 %v898, %v934
      %v967 = vadd.f32 %v899, %v935
      %v968 = vadd.f32 %v900, %v936
      %v969 = vlaneseq
      %v970 = vshrl.u32 %v969, 7
      %v971 = vsub.s32 0, %v970
      %v972 = vrot.slane %v828, %v971
      %v973 = vmul.f32 %v833, %v972
      %v974 = vmul.f32 %v834, %v972
      %v975 = vmul.f32 %v835, %v972
      %v976 = vmul.f32 %v836, %v972
      %v977 = vmul.f32 %v837, %v972
      %v978 = vmul.f32 %v838, %v972
      %v979 = vmul.f32 %v839, %v972
      %v980 = vmul.f32 %v840, %v972
      %v981 = vmul.f32 %v841, %v972
      %v982 = vmul.f32 %v842, %v972
      %v983 = vmul.f32 %v843, %v972
      %v984 = vmul.f32 %v844, %v972
      %v985 = vmul.f32 %v845, %v972
      %v986 = vmul.f32 %v846, %v972
      %v987 = vmul.f32 %v847, %v972
      %v988 = vmul.f32 %v848, %v972
      %v989 = vmul.f32 %v849, %v972
      %v990 = vmul.f32 %v850, %v972
      %v991 = vmul.f32 %v851, %v972
      %v992 = vmul.f32 %v852, %v972
      %v993 = vmul.f32 %v853, %v972
      %v994 = vmul.f32 %v854, %v972
      %v995 = vmul.f32 %v855, %v972
      %v996 = vmul.f32 %v856, %v972
      %v997 = vmul.f32 %v857, %v972
      %v998 = vmul.f32 %v858, %v972
      %v999 = vmul.f32 %v859, %v972
      %v1000 = vmul.f32 %v860, %v972
      %v1001 = vmul.f32 %v861, %v972
      %v1002 = vmul.f32 %v862, %v972
      %v1003 = vmul.f32 %v863, %v972
      %v1004 = vmul.f32 %v864, %v972
      %v1005 = vadd.f32 %v937, %v973
      %v1006 = vadd.f32 %v938, %v974
      %v1007 = vadd.f32 %v939, %v975
      %v1008 = vadd.f32 %v940, %v976
      %v1009 = vadd.f32 %v941, %v977
      %v1010 = vadd.f32 %v942, %v978
      %v1011 = vadd.f32 %v943, %v979
      %v1012 = vadd.f32 %v944, %v980
      %v1013 = vadd.f32 %v945, %v981
      %v1014 = vadd.f32 %v946, %v982
      %v1015 = vadd.f32 %v947, %v983
      %v1016 = vadd.f32 %v948, %v984
      %v1017 = vadd.f32 %v949, %v985
      %v1018 = vadd.f32 %v950, %v986
      %v1019 = vadd.f32 %v951, %v987
      %v1020 = vadd.f32 %v952, %v988
      %v1021 = vadd.f32 %v953, %v989
      %v1022 = vadd.f32 %v954, %v990
      %v1023 = vadd.f32 %v955, %v991
      %v1024 = vadd.f32 %v956, %v992
      %v1025 = vadd.f32 %v957, %v993
      %v1026 = vadd.f32 %v958, %v994
      %v1027 = vadd.f32 %v959, %v995
      %v1028 = vadd.f32 %v960, %v996
      %v1029 = vadd.f32 %v961, %v997
      %v1030 = vadd.f32 %v962, %v998
      %v1031 = vadd.f32 %v963, %v999
      %v1032 = vadd.f32 %v964, %v1000
      %v1033 = vadd.f32 %v965, %v1001
      %v1034 = vadd.f32 %v966, %v1002
      %v1035 = vadd.f32 %v967, %v1003
      %v1036 = vadd.f32 %v968, %v1004
      %v1037 = vld [vmem:[#allocation2 + $0x8] sm:$0xff]
      %v1038 = vld [vmem:[#allocation2 + $0x10] sm:$0xff]
      %v1039 = vld [vmem:[#allocation2 + $0x28] sm:$0xff]
      %v1040 = vld [vmem:[#allocation2 + $0x30] sm:$0xff]
      %v1041 = vld [vmem:[#allocation2 + $0x48] sm:$0xff]
      %v1042 = vld [vmem:[#allocation2 + $0x50] sm:$0xff]
      %v1043 = vld [vmem:[#allocation2 + $0x68] sm:$0xff]
      %v1044 = vld [vmem:[#allocation2 + $0x70] sm:$0xff]
      %v1045 = vld [vmem:[#allocation2 + $0x88] sm:$0xff]
      %v1046 = vld [vmem:[#allocation2 + $0x90] sm:$0xff]
      %v1047 = vld [vmem:[#allocation2 + $0xa8] sm:$0xff]
      %v1048 = vld [vmem:[#allocation2 + $0xb0] sm:$0xff]
      %v1049 = vld [vmem:[#allocation2 + $0xc8] sm:$0xff]
      %v1050 = vld [vmem:[#allocation2 + $0xd0] sm:$0xff]
      %v1051 = vld [vmem:[#allocation2 + $0xe8] sm:$0xff]
      %v1052 = vld [vmem:[#allocation2 + $0xf0] sm:$0xff]
      %v1053 = vld [vmem:[#allocation2 + $0x108] sm:$0xff]
      %v1054 = vld [vmem:[#allocation2 + $0x110] sm:$0xff]
      %v1055 = vld [vmem:[#allocation2 + $0x128] sm:$0xff]
      %v1056 = vld [vmem:[#allocation2 + $0x130] sm:$0xff]
      %v1057 = vld [vmem:[#allocation2 + $0x148] sm:$0xff]
      %v1058 = vld [vmem:[#allocation2 + $0x150] sm:$0xff]
      %v1059 = vld [vmem:[#allocation2 + $0x168] sm:$0xff]
      %v1060 = vld [vmem:[#allocation2 + $0x170] sm:$0xff]
      %v1061 = vld [vmem:[#allocation2 + $0x188] sm:$0xff]
      %v1062 = vld [vmem:[#allocation2 + $0x190] sm:$0xff]
      %v1063 = vld [vmem:[#allocation2 + $0x1a8] sm:$0xff]
      %v1064 = vld [vmem:[#allocation2 + $0x1b0] sm:$0xff]
      %v1065 = vld [vmem:[#allocation2 + $0x1c8] sm:$0xff]
      %v1066 = vld [vmem:[#allocation2 + $0x1d0] sm:$0xff]
      %v1067 = vld [vmem:[#allocation2 + $0x1e8] sm:$0xff]
      %v1068 = vld [vmem:[#allocation2 + $0x1f0] sm:$0xff]
      %v1069 = vld [vmem:[#allocation2 + $0x208] sm:$0xff]
      %v1070 = vld [vmem:[#allocation2 + $0x210] sm:$0xff]
      %v1071 = vld [vmem:[#allocation2 + $0x228] sm:$0xff]
      %v1072 = vld [vmem:[#allocation2 + $0x230] sm:$0xff]
      %v1073 = vlaneseq
      %v1074 = vshrl.u32 %v1073, 7
      %v1075 = vsub.s32 1, %v1074
      %v1076 = vrot.slane %v826, %v1075
      %v1077 = vmul.f32 %v1037, %v1076
      %v1078 = vmul.f32 %v1038, %v1076
      %v1079 = vmul.f32 %v1039, %v1076
      %v1080 = vmul.f32 %v1040, %v1076
      %v1081 = vmul.f32 %v1041, %v1076
      %v1082 = vmul.f32 %v1042, %v1076
      %v1083 = vmul.f32 %v1043, %v1076
      %v1084 = vmul.f32 %v1044, %v1076
      %v1085 = vmul.f32 %v1045, %v1076
      %v1086 = vmul.f32 %v1046, %v1076
      %v1087 = vmul.f32 %v1047, %v1076
      %v1088 = vmul.f32 %v1048, %v1076
      %v1089 = vmul.f32 %v1049, %v1076
      %v1090 = vmul.f32 %v1050, %v1076
      %v1091 = vmul.f32 %v1051, %v1076
      %v1092 = vmul.f32 %v1052, %v1076
      %v1093 = vmul.f32 %v1053, %v1076
      %v1094 = vmul.f32 %v1054, %v1076
      %v1095 = vmul.f32 %v1055, %v1076
      %v1096 = vmul.f32 %v1056, %v1076
      %v1097 = vmul.f32 %v1057, %v1076
      %v1098 = vmul.f32 %v1058, %v1076
      %v1099 = vmul.f32 %v1059, %v1076
      %v1100 = vmul.f32 %v1060, %v1076
      %v1101 = vmul.f32 %v1061, %v1076
      %v1102 = vmul.f32 %v1062, %v1076
      %v1103 = vmul.f32 %v1063, %v1076
      %v1104 = vmul.f32 %v1064, %v1076
      %v1105 = vmul.f32 %v1065, %v1076
      %v1106 = vmul.f32 %v1066, %v1076
      %v1107 = vmul.f32 %v1067, %v1076
      %v1108 = vmul.f32 %v1068, %v1076
      %v1109 = vadd.f32 %v1005, %v1077
      %v1110 = vadd.f32 %v1006, %v1078
      %v1111 = vadd.f32 %v1007, %v1079
      %v1112 = vadd.f32 %v1008, %v1080
      %v1113 = vadd.f32 %v1009, %v1081
      %v1114 = vadd.f32 %v1010, %v1082
      %v1115 = vadd.f32 %v1011, %v1083
      %v1116 = vadd.f32 %v1012, %v1084
      %v1117 = vadd.f32 %v1013, %v1085
      %v1118 = vadd.f32 %v1014, %v1086
      %v1119 = vadd.f32 %v1015, %v1087
      %v1120 = vadd.f32 %v1016, %v1088
      %v1121 = vadd.f32 %v1017, %v1089
      %v1122 = vadd.f32 %v1018, %v1090
      %v1123 = vadd.f32 %v1019, %v1091
      %v1124 = vadd.f32 %v1020, %v1092
      %v1125 = vadd.f32 %v1021, %v1093
      %v1126 = vadd.f32 %v1022, %v1094
      %v1127 = vadd.f32 %v1023, %v1095
      %v1128 = vadd.f32 %v1024, %v1096
      %v1129 = vadd.f32 %v1025, %v1097
      %v1130 = vadd.f32 %v1026, %v1098
      %v1131 = vadd.f32 %v1027, %v1099
      %v1132 = vadd.f32 %v1028, %v1100
      %v1133 = vadd.f32 %v1029, %v1101
      %v1134 = vadd.f32 %v1030, %v1102
      %v1135 = vadd.f32 %v1031, %v1103
      %v1136 = vadd.f32 %v1032, %v1104
      %v1137 = vadd.f32 %v1033, %v1105
      %v1138 = vadd.f32 %v1034, %v1106
      %v1139 = vadd.f32 %v1035, %v1107
      %v1140 = vadd.f32 %v1036, %v1108
      %v1141 = vlaneseq
      %v1142 = vshrl.u32 %v1141, 7
      %v1143 = vsub.s32 1, %v1142
      %v1144 = vrot.slane %v827, %v1143
      %v1145 = vmul.f32 %v1039, %v1144
      %v1146 = vmul.f32 %v1040, %v1144
      %v1147 = vmul.f32 %v1041, %v1144
      %v1148 = vmul.f32 %v1042, %v1144
      %v1149 = vmul.f32 %v1043, %v1144
      %v1150 = vmul.f32 %v1044, %v1144
      %v1151 = vmul.f32 %v1045, %v1144
      %v1152 = vmul.f32 %v1046, %v1144
      %v1153 = vmul.f32 %v1047, %v1144
      %v1154 = vmul.f32 %v1048, %v1144
      %v1155 = vmul.f32 %v1049, %v1144
      %v1156 = vmul.f32 %v1050, %v1144
      %v1157 = vmul.f32 %v1051, %v1144
      %v1158 = vmul.f32 %v1052, %v1144
      %v1159 = vmul.f32 %v1053, %v1144
      %v1160 = vmul.f32 %v1054, %v1144
      %v1161 = vmul.f32 %v1055, %v1144
      %v1162 = vmul.f32 %v1056, %v1144
      %v1163 = vmul.f32 %v1057, %v1144
      %v1164 = vmul.f32 %v1058, %v1144
      %v1165 = vmul.f32 %v1059, %v1144
      %v1166 = vmul.f32 %v1060, %v1144
      %v1167 = vmul.f32 %v1061, %v1144
      %v1168 = vmul.f32 %v1062, %v1144
      %v1169 = vmul.f32 %v1063, %v1144
      %v1170 = vmul.f32 %v1064, %v1144
      %v1171 = vmul.f32 %v1065, %v1144
      %v1172 = vmul.f32 %v1066, %v1144
      %v1173 = vmul.f32 %v1067, %v1144
      %v1174 = vmul.f32 %v1068, %v1144
      %v1175 = vmul.f32 %v1069, %v1144
      %v1176 = vmul.f32 %v1070, %v1144
      %v1177 = vadd.f32 %v1109, %v1145
      %v1178 = vadd.f32 %v1110, %v1146
      %v1179 = vadd.f32 %v1111, %v1147
      %v1180 = vadd.f32 %v1112, %v1148
      %v1181 = vadd.f32 %v1113, %v1149
      %v1182 = vadd.f32 %v1114, %v1150
      %v1183 = vadd.f32 %v1115, %v1151
      %v1184 = vadd.f32 %v1116, %v1152
      %v1185 = vadd.f32 %v1117, %v1153
      %v1186 = vadd.f32 %v1118, %v1154
      %v1187 = vadd.f32 %v1119, %v1155
      %v1188 = vadd.f32 %v1120, %v1156
      %v1189 = vadd.f32 %v1121, %v1157
      %v1190 = vadd.f32 %v1122, %v1158
      %v1191 = vadd.f32 %v1123, %v1159
      %v1192 = vadd.f32 %v1124, %v1160
      %v1193 = vadd.f32 %v1125, %v1161
      %v1194 = vadd.f32 %v1126, %v1162
      %v1195 = vadd.f32 %v1127, %v1163
      %v1196 = vadd.f32 %v1128, %v1164
      %v1197 = vadd.f32 %v1129, %v1165
      %v1198 = vadd.f32 %v1130, %v1166
      %v1199 = vadd.f32 %v1131, %v1167
      %v1200 = vadd.f32 %v1132, %v1168
      %v1201 = vadd.f32 %v1133, %v1169
      %v1202 = vadd.f32 %v1134, %v1170
      %v1203 = vadd.f32 %v1135, %v1171
      %v1204 = vadd.f32 %v1136, %v1172
      %v1205 = vadd.f32 %v1137, %v1173
      %v1206 = vadd.f32 %v1138, %v1174
      %v1207 = vadd.f32 %v1139, %v1175
      %v1208 = vadd.f32 %v1140, %v1176
      %v1209 = vlaneseq
      %v1210 = vshrl.u32 %v1209, 7
      %v1211 = vsub.s32 1, %v1210
      %v1212 = vrot.slane %v828, %v1211
      %v1213 = vmul.f32 %v1041, %v1212
      %v1214 = vmul.f32 %v1042, %v1212
      %v1215 = vmul.f32 %v1043, %v1212
      %v1216 = vmul.f32 %v1044, %v1212
      %v1217 = vmul.f32 %v1045, %v1212
      %v1218 = vmul.f32 %v1046, %v1212
      %v1219 = vmul.f32 %v1047, %v1212
      %v1220 = vmul.f32 %v1048, %v1212
      %v1221 = vmul.f32 %v1049, %v1212
      %v1222 = vmul.f32 %v1050, %v1212
      %v1223 = vmul.f32 %v1051, %v1212
      %v1224 = vmul.f32 %v1052, %v1212
      %v1225 = vmul.f32 %v1053, %v1212
      %v1226 = vmul.f32 %v1054, %v1212
      %v1227 = vmul.f32 %v1055, %v1212
      %v1228 = vmul.f32 %v1056, %v1212
      %v1229 = vmul.f32 %v1057, %v1212
      %v1230 = vmul.f32 %v1058, %v1212
      %v1231 = vmul.f32 %v1059, %v1212
      %v1232 = vmul.f32 %v1060, %v1212
      %v1233 = vmul.f32 %v1061, %v1212
      %v1234 = vmul.f32 %v1062, %v1212
      %v1235 = vmul.f32 %v1063, %v1212
      %v1236 = vmul.f32 %v1064, %v1212
      %v1237 = vmul.f32 %v1065, %v1212
      %v1238 = vmul.f32 %v1066, %v1212
      %v1239 = vmul.f32 %v1067, %v1212
      %v1240 = vmul.f32 %v1068, %v1212
      %v1241 = vmul.f32 %v1069, %v1212
      %v1242 = vmul.f32 %v1070, %v1212
      %v1243 = vmul.f32 %v1071, %v1212
      %v1244 = vmul.f32 %v1072, %v1212
      %v1245 = vadd.f32 %v1177, %v1213
      %v1246 = vadd.f32 %v1178, %v1214
      %v1247 = vadd.f32 %v1179, %v1215
      %v1248 = vadd.f32 %v1180, %v1216
      %v1249 = vadd.f32 %v1181, %v1217
      %v1250 = vadd.f32 %v1182, %v1218
      %v1251 = vadd.f32 %v1183, %v1219
      %v1252 = vadd.f32 %v1184, %v1220
      %v1253 = vadd.f32 %v1185, %v1221
      %v1254 = vadd.f32 %v1186, %v1222
      %v1255 = vadd.f32 %v1187, %v1223
      %v1256 = vadd.f32 %v1188, %v1224
      %v1257 = vadd.f32 %v1189, %v1225
      %v1258 = vadd.f32 %v1190, %v1226
      %v1259 = vadd.f32 %v1191, %v1227
      %v1260 = vadd.f32 %v1192, %v1228
      %v1261 = vadd.f32 %v1193, %v1229
      %v1262 = vadd.f32 %v1194, %v1230
      %v1263 = vadd.f32 %v1195, %v1231
      %v1264 = vadd.f32 %v1196, %v1232
      %v1265 = vadd.f32 %v1197, %v1233
      %v1266 = vadd.f32 %v1198, %v1234
      %v1267 = vadd.f32 %v1199, %v1235
      %v1268 = vadd.f32 %v1200, %v1236
      %v1269 = vadd.f32 %v1201, %v1237
      %v1270 = vadd.f32 %v1202, %v1238
      %v1271 = vadd.f32 %v1203, %v1239
      %v1272 = vadd.f32 %v1204, %v1240
      %v1273 = vadd.f32 %v1205, %v1241
      %v1274 = vadd.f32 %v1206, %v1242
      %v1275 = vadd.f32 %v1207, %v1243
      %v1276 = vadd.f32 %v1208, %v1244
      %v1277 = vld [vmem:[#allocation2 + $0x9] sm:$0xff]
      %v1278 = vld [vmem:[#allocation2 + $0x11] sm:$0xff]
      %v1279 = vld [vmem:[#allocation2 + $0x29] sm:$0xff]
      %v1280 = vld [vmem:[#allocation2 + $0x31] sm:$0xff]
      %v1281 = vld [vmem:[#allocation2 + $0x49] sm:$0xff]
      %v1282 = vld [vmem:[#allocation2 + $0x51] sm:$0xff]
      %v1283 = vld [vmem:[#allocation2 + $0x69] sm:$0xff]
      %v1284 = vld [vmem:[#allocation2 + $0x71] sm:$0xff]
      %v1285 = vld [vmem:[#allocation2 + $0x89] sm:$0xff]
      %v1286 = vld [vmem:[#allocation2 + $0x91] sm:$0xff]
      %v1287 = vld [vmem:[#allocation2 + $0xa9] sm:$0xff]
      %v1288 = vld [vmem:[#allocation2 + $0xb1] sm:$0xff]
      %v1289 = vld [vmem:[#allocation2 + $0xc9] sm:$0xff]
      %v1290 = vld [vmem:[#allocation2 + $0xd1] sm:$0xff]
      %v1291 = vld [vmem:[#allocation2 + $0xe9] sm:$0xff]
      %v1292 = vld [vmem:[#allocation2 + $0xf1] sm:$0xff]
      %v1293 = vld [vmem:[#allocation2 + $0x109] sm:$0xff]
      %v1294 = vld [vmem:[#allocation2 + $0x111] sm:$0xff]
      %v1295 = vld [vmem:[#allocation2 + $0x129] sm:$0xff]
      %v1296 = vld [vmem:[#allocation2 + $0x131] sm:$0xff]
      %v1297 = vld [vmem:[#allocation2 + $0x149] sm:$0xff]
      %v1298 = vld [vmem:[#allocation2 + $0x151] sm:$0xff]
      %v1299 = vld [vmem:[#allocation2 + $0x169] sm:$0xff]
      %v1300 = vld [vmem:[#allocation2 + $0x171] sm:$0xff]
      %v1301 = vld [vmem:[#allocation2 + $0x189] sm:$0xff]
      %v1302 = vld [vmem:[#allocation2 + $0x191] sm:$0xff]
      %v1303 = vld [vmem:[#allocation2 + $0x1a9] sm:$0xff]
      %v1304 = vld [vmem:[#allocation2 + $0x1b1] sm:$0xff]
      %v1305 = vld [vmem:[#allocation2 + $0x1c9] sm:$0xff]
      %v1306 = vld [vmem:[#allocation2 + $0x1d1] sm:$0xff]
      %v1307 = vld [vmem:[#allocation2 + $0x1e9] sm:$0xff]
      %v1308 = vld [vmem:[#allocation2 + $0x1f1] sm:$0xff]
      %v1309 = vld [vmem:[#allocation2 + $0x209] sm:$0xff]
      %v1310 = vld [vmem:[#allocation2 + $0x211] sm:$0xff]
      %v1311 = vld [vmem:[#allocation2 + $0x229] sm:$0xff]
      %v1312 = vld [vmem:[#allocation2 + $0x231] sm:$0xff]
      %v1313 = vlaneseq
      %v1314 = vshrl.u32 %v1313, 7
      %v1315 = vsub.s32 2, %v1314
      %v1316 = vrot.slane %v826, %v1315
      %v1317 = vmul.f32 %v1277, %v1316
      %v1318 = vmul.f32 %v1278, %v1316
      %v1319 = vmul.f32 %v1279, %v1316
      %v1320 = vmul.f32 %v1280, %v1316
      %v1321 = vmul.f32 %v1281, %v1316
      %v1322 = vmul.f32 %v1282, %v1316
      %v1323 = vmul.f32 %v1283, %v1316
      %v1324 = vmul.f32 %v1284, %v1316
      %v1325 = vmul.f32 %v1285, %v1316
      %v1326 = vmul.f32 %v1286, %v1316
      %v1327 = vmul.f32 %v1287, %v1316
      %v1328 = vmul.f32 %v1288, %v1316
      %v1329 = vmul.f32 %v1289, %v1316
      %v1330 = vmul.f32 %v1290, %v1316
      %v1331 = vmul.f32 %v1291, %v1316
      %v1332 = vmul.f32 %v1292, %v1316
      %v1333 = vmul.f32 %v1293, %v1316
      %v1334 = vmul.f32 %v1294, %v1316
      %v1335 = vmul.f32 %v1295, %v1316
      %v1336 = vmul.f32 %v1296, %v1316
      %v1337 = vmul.f32 %v1297, %v1316
      %v1338 = vmul.f32 %v1298, %v1316
      %v1339 = vmul.f32 %v1299, %v1316
      %v1340 = vmul.f32 %v1300, %v1316
      %v1341 = vmul.f32 %v1301, %v1316
      %v1342 = vmul.f32 %v1302, %v1316
      %v1343 = vmul.f32 %v1303, %v1316
      %v1344 = vmul.f32 %v1304, %v1316
      %v1345 = vmul.f32 %v1305, %v1316
      %v1346 = vmul.f32 %v1306, %v1316
      %v1347 = vmul.f32 %v1307, %v1316
      %v1348 = vmul.f32 %v1308, %v1316
      %v1349 = vadd.f32 %v1245, %v1317
      %v1350 = vadd.f32 %v1246, %v1318
      %v1351 = vadd.f32 %v1247, %v1319
      %v1352 = vadd.f32 %v1248, %v1320
      %v1353 = vadd.f32 %v1249, %v1321
      %v1354 = vadd.f32 %v1250, %v1322
      %v1355 = vadd.f32 %v1251, %v1323
      %v1356 = vadd.f32 %v1252, %v1324
      %v1357 = vadd.f32 %v1253, %v1325
      %v1358 = vadd.f32 %v1254, %v1326
      %v1359 = vadd.f32 %v1255, %v1327
      %v1360 = vadd.f32 %v1256, %v1328
      %v1361 = vadd.f32 %v1257, %v1329
      %v1362 = vadd.f32 %v1258, %v1330
      %v1363 = vadd.f32 %v1259, %v1331
      %v1364 = vadd.f32 %v1260, %v1332
      %v1365 = vadd.f32 %v1261, %v1333
      %v1366 = vadd.f32 %v1262, %v1334
      %v1367 = vadd.f32 %v1263, %v1335
      %v1368 = vadd.f32 %v1264, %v1336
      %v1369 = vadd.f32 %v1265, %v1337
      %v1370 = vadd.f32 %v1266, %v1338
      %v1371 = vadd.f32 %v1267, %v1339
      %v1372 = vadd.f32 %v1268, %v1340
      %v1373 = vadd.f32 %v1269, %v1341
      %v1374 = vadd.f32 %v1270, %v1342
      %v1375 = vadd.f32 %v1271, %v1343
      %v1376 = vadd.f32 %v1272, %v1344
      %v1377 = vadd.f32 %v1273, %v1345
      %v1378 = vadd.f32 %v1274, %v1346
      %v1379 = vadd.f32 %v1275, %v1347
      %v1380 = vadd.f32 %v1276, %v1348
      %v1381 = vlaneseq
      %v1382 = vshrl.u32 %v1381, 7
      %v1383 = vsub.s32 2, %v1382
      %v1384 = vrot.slane %v827, %v1383
      %v1385 = vmul.f32 %v1279, %v1384
      %v1386 = vmul.f32 %v1280, %v1384
      %v1387 = vmul.f32 %v1281, %v1384
      %v1388 = vmul.f32 %v1282, %v1384
      %v1389 = vmul.f32 %v1283, %v1384
      %v1390 = vmul.f32 %v1284, %v1384
      %v1391 = vmul.f32 %v1285, %v1384
      %v1392 = vmul.f32 %v1286, %v1384
      %v1393 = vmul.f32 %v1287, %v1384
      %v1394 = vmul.f32 %v1288, %v1384
      %v1395 = vmul.f32 %v1289, %v1384
      %v1396 = vmul.f32 %v1290, %v1384
      %v1397 = vmul.f32 %v1291, %v1384
      %v1398 = vmul.f32 %v1292, %v1384
      %v1399 = vmul.f32 %v1293, %v1384
      %v1400 = vmul.f32 %v1294, %v1384
      %v1401 = vmul.f32 %v1295, %v1384
      %v1402 = vmul.f32 %v1296, %v1384
      %v1403 = vmul.f32 %v1297, %v1384
      %v1404 = vmul.f32 %v1298, %v1384
      %v1405 = vmul.f32 %v1299, %v1384
      %v1406 = vmul.f32 %v1300, %v1384
      %v1407 = vmul.f32 %v1301, %v1384
      %v1408 = vmul.f32 %v1302, %v1384
      %v1409 = vmul.f32 %v1303, %v1384
      %v1410 = vmul.f32 %v1304, %v1384
      %v1411 = vmul.f32 %v1305, %v1384
      %v1412 = vmul.f32 %v1306, %v1384
      %v1413 = vmul.f32 %v1307, %v1384
      %v1414 = vmul.f32 %v1308, %v1384
      %v1415 = vmul.f32 %v1309, %v1384
      %v1416 = vmul.f32 %v1310, %v1384
      %v1417 = vadd.f32 %v1349, %v1385
      %v1418 = vadd.f32 %v1350, %v1386
      %v1419 = vadd.f32 %v1351, %v1387
      %v1420 = vadd.f32 %v1352, %v1388
      %v1421 = vadd.f32 %v1353, %v1389
      %v1422 = vadd.f32 %v1354, %v1390
      %v1423 = vadd.f32 %v1355, %v1391
      %v1424 = vadd.f32 %v1356, %v1392
      %v1425 = vadd.f32 %v1357, %v1393
      %v1426 = vadd.f32 %v1358, %v1394
      %v1427 = vadd.f32 %v1359, %v1395
      %v1428 = vadd.f32 %v1360, %v1396
      %v1429 = vadd.f32 %v1361, %v1397
      %v1430 = vadd.f32 %v1362, %v1398
      %v1431 = vadd.f32 %v1363, %v1399
      %v1432 = vadd.f32 %v1364, %v1400
      %v1433 = vadd.f32 %v1365, %v1401
      %v1434 = vadd.f32 %v1366, %v1402
      %v1435 = vadd.f32 %v1367, %v1403
      %v1436 = vadd.f32 %v1368, %v1404
      %v1437 = vadd.f32 %v1369, %v1405
      %v1438 = vadd.f32 %v1370, %v1406
      %v1439 = vadd.f32 %v1371, %v1407
      %v1440 = vadd.f32 %v1372, %v1408
      %v1441 = vadd.f32 %v1373, %v1409
      %v1442 = vadd.f32 %v1374, %v1410
      %v1443 = vadd.f32 %v1375, %v1411
      %v1444 = vadd.f32 %v1376, %v1412
      %v1445 = vadd.f32 %v1377, %v1413
      %v1446 = vadd.f32 %v1378, %v1414
      %v1447 = vadd.f32 %v1379, %v1415
      %v1448 = vadd.f32 %v1380, %v1416
      %v1449 = vlaneseq
      %v1450 = vshrl.u32 %v1449, 7
      %v1451 = vsub.s32 2, %v1450
      %v1452 = vrot.slane %v828, %v1451
      %v1453 = vmul.f32 %v1281, %v1452
      %v1454 = vmul.f32 %v1282, %v1452
      %v1455 = vmul.f32 %v1283, %v1452
      %v1456 = vmul.f32 %v1284, %v1452
      %v1457 = vmul.f32 %v1285, %v1452
      %v1458 = vmul.f32 %v1286, %v1452
      %v1459 = vmul.f32 %v1287, %v1452
      %v1460 = vmul.f32 %v1288, %v1452
      %v1461 = vmul.f32 %v1289, %v1452
      %v1462 = vmul.f32 %v1290, %v1452
      %v1463 = vmul.f32 %v1291, %v1452
      %v1464 = vmul.f32 %v1292, %v1452
      %v1465 = vmul.f32 %v1293, %v1452
      %v1466 = vmul.f32 %v1294, %v1452
      %v1467 = vmul.f32 %v1295, %v1452
      %v1468 = vmul.f32 %v1296, %v1452
      %v1469 = vmul.f32 %v1297, %v1452
      %v1470 = vmul.f32 %v1298, %v1452
      %v1471 = vmul.f32 %v1299, %v1452
      %v1472 = vmul.f32 %v1300, %v1452
      %v1473 = vmul.f32 %v1301, %v1452
      %v1474 = vmul.f32 %v1302, %v1452
      %v1475 = vmul.f32 %v1303, %v1452
      %v1476 = vmul.f32 %v1304, %v1452
      %v1477 = vmul.f32 %v1305, %v1452
      %v1478 = vmul.f32 %v1306, %v1452
      %v1479 = vmul.f32 %v1307, %v1452
      %v1480 = vmul.f32 %v1308, %v1452
      %v1481 = vmul.f32 %v1309, %v1452
      %v1482 = vmul.f32 %v1310, %v1452
      %v1483 = vmul.f32 %v1311, %v1452
      %v1484 = vmul.f32 %v1312, %v1452
      %v1485 = vadd.f32 %v1417, %v1453
      %v1486 = vadd.f32 %v1418, %v1454
      %v1487 = vadd.f32 %v1419, %v1455
      %v1488 = vadd.f32 %v1420, %v1456
      %v1489 = vadd.f32 %v1421, %v1457
      %v1490 = vadd.f32 %v1422, %v1458
      %v1491 = vadd.f32 %v1423, %v1459
      %v1492 = vadd.f32 %v1424, %v1460
      %v1493 = vadd.f32 %v1425, %v1461
      %v1494 = vadd.f32 %v1426, %v1462
      %v1495 = vadd.f32 %v1427, %v1463
      %v1496 = vadd.f32 %v1428, %v1464
      %v1497 = vadd.f32 %v1429, %v1465
      %v1498 = vadd.f32 %v1430, %v1466
      %v1499 = vadd.f32 %v1431, %v1467
      %v1500 = vadd.f32 %v1432, %v1468
      %v1501 = vadd.f32 %v1433, %v1469
      %v1502 = vadd.f32 %v1434, %v1470
      %v1503 = vadd.f32 %v1435, %v1471
      %v1504 = vadd.f32 %v1436, %v1472
      %v1505 = vadd.f32 %v1437, %v1473
      %v1506 = vadd.f32 %v1438, %v1474
      %v1507 = vadd.f32 %v1439, %v1475
      %v1508 = vadd.f32 %v1440, %v1476
      %v1509 = vadd.f32 %v1441, %v1477
      %v1510 = vadd.f32 %v1442, %v1478
      %v1511 = vadd.f32 %v1443, %v1479
      %v1512 = vadd.f32 %v1444, %v1480
      %v1513 = vadd.f32 %v1445, %v1481
      %v1514 = vadd.f32 %v1446, %v1482
      %v1515 = vadd.f32 %v1447, %v1483
      %v1516 = vadd.f32 %v1448, %v1484
      %v1517 = vld [vmem:[%s4] sm:$0x1]
      %v1519 = vlaneseq
      %v1520 = vshrl.u32 %v1519, 7
      %v1521 = vsub.s32 0, %v1520
      %v1522 = vrot.slane %v1517, %v1521
      %v1524 = vadd.f32 %v1485, %v1522
      %v1525 = vadd.f32 %v1486, %v1522
      %v1526 = vadd.f32 %v1487, %v1522
      %v1527 = vadd.f32 %v1488, %v1522
      %v1528 = vadd.f32 %v1489, %v1522
      %v1529 = vadd.f32 %v1490, %v1522
      %v1530 = vadd.f32 %v1491, %v1522
      %v1531 = vadd.f32 %v1492, %v1522
      %v1532 = vadd.f32 %v1493, %v1522
      %v1533 = vadd.f32 %v1494, %v1522
      %v1534 = vadd.f32 %v1495, %v1522
      %v1535 = vadd.f32 %v1496, %v1522
      %v1536 = vadd.f32 %v1497, %v1522
      %v1537 = vadd.f32 %v1498, %v1522
      %v1538 = vadd.f32 %v1499, %v1522
      %v1539 = vadd.f32 %v1500, %v1522
      %v1540 = vadd.f32 %v1501, %v1522
      %v1541 = vadd.f32 %v1502, %v1522
      %v1542 = vadd.f32 %v1503, %v1522
      %v1543 = vadd.f32 %v1504, %v1522
      %v1544 = vadd.f32 %v1505, %v1522
      %v1545 = vadd.f32 %v1506, %v1522
      %v1546 = vadd.f32 %v1507, %v1522
      %v1547 = vadd.f32 %v1508, %v1522
      %v1548 = vadd.f32 %v1509, %v1522
      %v1549 = vadd.f32 %v1510, %v1522
      %v1550 = vadd.f32 %v1511, %v1522
      %v1551 = vadd.f32 %v1512, %v1522
      %v1552 = vadd.f32 %v1513, %v1522
      %v1553 = vadd.f32 %v1514, %v1522
      %v1554 = vadd.f32 %v1515, %v1522
      %v1555 = vadd.f32 %v1516, %v1522
      %v1556 = vmax.f32 %v1524, 0.0
      %v1557 = vmax.f32 %v1525, 0.0
      %v1558 = vmax.f32 %v1526, 0.0
      %v1559 = vmax.f32 %v1527, 0.0
      %v1560 = vmax.f32 %v1528, 0.0
      %v1561 = vmax.f32 %v1529, 0.0
      %v1562 = vmax.f32 %v1530, 0.0
      %v1563 = vmax.f32 %v1531, 0.0
      %v1564 = vmax.f32 %v1532, 0.0
      %v1565 = vmax.f32 %v1533, 0.0
      %v1566 = vmax.f32 %v1534, 0.0
      %v1567 = vmax.f32 %v1535, 0.0
      %v1568 = vmax.f32 %v1536, 0.0
      %v1569 = vmax.f32 %v1537, 0.0
      %v1570 = vmax.f32 %v1538, 0.0
      %v1571 = vmax.f32 %v1539, 0.0
      %v1572 = vmax.f32 %v1540, 0.0
      %v1573 = vmax.f32 %v1541, 0.0
      %v1574 = vmax.f32 %v1542, 0.0
      %v1575 = vmax.f32 %v1543, 0.0
      %v1576 = vmax.f32 %v1544, 0.0
      %v1577 = vmax.f32 %v1545, 0.0
      %v1578 = vmax.f32 %v1546, 0.0
      %v1579 = vmax.f32 %v1547, 0.0
      %v1580 = vmax.f32 %v1548, 0.0
      %v1581 = vmax.f32 %v1549, 0.0
      %v1582 = vmax.f32 %v1550, 0.0
      %v1583 = vmax.f32 %v1551, 0.0
      %v1584 = vmax.f32 %v1552, 0.0
      %v1585 = vmax.f32 %v1553, 0.0
      %v1586 = vmax.f32 %v1554, 0.0
      %v1587 = vmax.f32 %v1555, 0.0
      %v1588 = vmin.f32 %v1556, 6.0
      %v1589 = vmin.f32 %v1557, 6.0
      %v1590 = vmin.f32 %v1558, 6.0
      %v1591 = vmin.f32 %v1559, 6.0
      %v1592 = vmin.f32 %v1560, 6.0
      %v1593 = vmin.f32 %v1561, 6.0
      %v1594 = vmin.f32 %v1562, 6.0
      %v1595 = vmin.f32 %v1563, 6.0
      %v1596 = vmin.f32 %v1564, 6.0
      %v1597 = vmin.f32 %v1565, 6.0
      %v1598 = vmin.f32 %v1566, 6.0
      %v1599 = vmin.f32 %v1567, 6.0
      %v1600 = vmin.f32 %v1568, 6.0
      %v1601 = vmin.f32 %v1569, 6.0
      %v1602 = vmin.f32 %v1570, 6.0
      %v1603 = vmin.f32 %v1571, 6.0
      %v1604 = vmin.f32 %v1572, 6.0
      %v1605 = vmin.f32 %v1573, 6.0
      %v1606 = vmin.f32 %v1574, 6.0
      %v1607 = vmin.f32 %v1575, 6.0
      %v1608 = vmin.f32 %v1576, 6.0
      %v1609 = vmin.f32 %v1577, 6.0
      %v1610 = vmin.f32 %v1578, 6.0
      %v1611 = vmin.f32 %v1579, 6.0
      %v1612 = vmin.f32 %v1580, 6.0
      %v1613 = vmin.f32 %v1581, 6.0
      %v1614 = vmin.f32 %v1582, 6.0
      %v1615 = vmin.f32 %v1583, 6.0
      %v1616 = vmin.f32 %v1584, 6.0
      %v1617 = vmin.f32 %v1585, 6.0
      %v1618 = vmin.f32 %v1586, 6.0
      %v1619 = vmin.f32 %v1587, 6.0
      %v1620 = vld [vmem:[%s5] sm:$0xff]
      %v1621 = vld [vmem:[%s5 + $0x8] sm:$0xff]
      %v1622 = vld [vmem:[%s5 + $0x10] sm:$0xff]
      %v1623 = vld [vmem:[%s5 + $0x18] sm:$0xff]
      %v1624 = vld [vmem:[%s5 + $0x20] sm:$0xff]
      %v1625 = vld [vmem:[%s5 + $0x28] sm:$0xff]
      %v1626 = vld [vmem:[%s6] sm:$0x1]
      %v1628 = vlaneseq
      %v1629 = vshrl.u32 %v1628, 7
      %v1630 = vsub.s32 0, %v1629
      %v1631 = vrot.slane %v1626, %v1630
      %v1634 = vsel %vm705, %v1588, 0
      %v1637 = vsel %vm705, %v1589, 0
      %v1640 = vsel %vm705, %v1590, 0
      %v1643 = vsel %vm705, %v1591, 0
      %v1646 = vsel %vm705, %v1592, 0
      %v1649 = vsel %vm705, %v1593, 0
      %v1652 = vsel %vm705, %v1594, 0
      %v1655 = vsel %vm705, %v1595, 0
      %v1658 = vsel %vm705, %v1596, 0
      %v1661 = vsel %vm705, %v1597, 0
      %v1664 = vsel %vm705, %v1598, 0
      %v1667 = vsel %vm705, %v1599, 0
      %v1670 = vsel %vm705, %v1600, 0
      %v1673 = vsel %vm705, %v1601, 0
      %v1676 = vsel %vm705, %v1602, 0
      %v1679 = vsel %vm705, %v1603, 0
      %v1682 = vsel %vm705, %v1604, 0
      %v1685 = vsel %vm705, %v1605, 0
      %v1688 = vsel %vm705, %v1606, 0
      %v1691 = vsel %vm705, %v1607, 0
      %v1694 = vsel %vm705, %v1608, 0
      %v1697 = vsel %vm705, %v1609, 0
      %v1700 = vsel %vm705, %v1610, 0
      %v1703 = vsel %vm705, %v1611, 0
      %v1706 = vsel %vm705, %v1612, 0
      %v1709 = vsel %vm705, %v1613, 0
      %v1712 = vsel %vm705, %v1614, 0
      %v1715 = vsel %vm705, %v1615, 0
      %v1718 = vsel %vm705, %v1616, 0
      %v1721 = vsel %vm705, %v1617, 0
      %v1724 = vsel %vm705, %v1618, 0
      %v1727 = vsel %vm705, %v1619, 0
      %1729 = vmatprep.subr.mxu0 0.0
      %1730 = vmatpush1.msra.mxu0 %v1620
      %1731 = vmatprep.subr.mxu0 0.0
      %1732 = vmatpush1.msra.mxu0 %v1621
      %1733 = vmatprep.subr.mxu0 0.0
      %1734 = vmatpush1.msra.mxu0 %v1622
      %1735 = vmatprep.subr.mxu0 0.0
      %1736 = vmatpush1.msra.mxu0 %v1623
      %1737 = vmatprep.subr.mxu0 0.0
      %1738 = vmatpush1.msra.mxu0 %v1624
      %1739 = vmatprep.subr.mxu0 0.0
      %1740 = vmatpush1.msra.mxu0 %v1625
      %1741 = vmatprep.subr.mxu0 0.0
      %1742 = vmatpush1.msra.mxu0 0.0
      %1743 = vmatprep.subr.mxu0 0.0
      %1744 = vmatpush1.msra.mxu0 0.0
      %1745 = vmatprep.subr.mxu0 0.0
      %1746 = vmatpush1.msra.mxu0 0.0
      %1747 = vmatprep.subr.mxu0 0.0
      %1748 = vmatpush1.msra.mxu0 0.0
      %1749 = vmatprep.subr.mxu0 0.0
      %1750 = vmatpush1.msra.mxu0 0.0
      %1751 = vmatprep.subr.mxu0 0.0
      %1752 = vmatpush1.msra.mxu0 0.0
      %1753 = vmatprep.subr.mxu0 0.0
      %1754 = vmatpush1.msra.mxu0 0.0
      %1755 = vmatprep.subr.mxu0 0.0
      %1756 = vmatpush1.msra.mxu0 0.0
      %1757 = vmatprep.subr.mxu0 0.0
      %1758 = vmatpush1.msra.mxu0 0.0
      %1759 = vmatprep.subr.mxu0 0.0
      %1760 = vmatpush1.msra.mxu0 0.0
      %1761 = vmatprep.subr.mxu0 0.0
      %1762 = vmatpush1.msra.mxu0 0.0
      %1763 = vmatprep.subr.mxu0 0.0
      %1764 = vmatpush1.msra.mxu0 0.0
      %1765 = vmatprep.subr.mxu0 0.0
      %1766 = vmatpush1.msra.mxu0 0.0
      %1767 = vmatprep.subr.mxu0 0.0
      %1768 = vmatpush1.msra.mxu0 0.0
      %1769 = vmatprep.subr.mxu0 0.0
      %1770 = vmatpush1.msra.mxu0 0.0
      %1771 = vmatprep.subr.mxu0 0.0
      %1772 = vmatpush1.msra.mxu0 0.0
      %1773 = vmatprep.subr.mxu0 0.0
      %1774 = vmatpush1.msra.mxu0 0.0
      %1775 = vmatprep.subr.mxu0 0.0
      %1776 = vmatpush1.msra.mxu0 0.0
      %1777 = vmatprep.subr.mxu0 0.0
      %1778 = vmatpush1.msra.mxu0 0.0
      %1779 = vmatprep.subr.mxu0 0.0
      %1780 = vmatpush1.msra.mxu0 0.0
      %1781 = vmatprep.subr.mxu0 0.0
      %1782 = vmatpush1.msra.mxu0 0.0
      %1783 = vmatprep.subr.mxu0 0.0
      %1784 = vmatpush1.msra.mxu0 0.0
      %1785 = vmatprep.subr.mxu0 0.0
      %1786 = vmatpush1.msra.mxu0 0.0
      %1787 = vmatprep.subr.mxu0 0.0
      %1788 = vmatpush1.msra.mxu0 0.0
      %1789 = vmatprep.subr.mxu0 0.0
      %1790 = vmatpush1.msra.mxu0 0.0
      %1791 = vmatprep.subr.mxu0 0.0
      %1792 = vmatpush1.msra.mxu0 0.0
      %1793 = vmatprep.mubr.f32.mxu0 0.0
      %1794 = vmatmul.mubr.f32.gmra.mrb[0].mxu0 %v1634
      %v1795 = vpop.f32.mrb[0].mxu0
      %v1796 = vadd.f32 %v1631, %v1795
      %v1797 = vpop.f32.mrb[0].mxu0
      %1798 = vmatprep.mubr.f32.mxu0 0.0
      %1799 = vmatmul.mubr.f32.gmra.mrb[0].mxu0 %v1637
      %v1800 = vpop.f32.mrb[0].mxu0
      %v1801 = vadd.f32 %v1631, %v1800
      %v1802 = vpop.f32.mrb[0].mxu0
      %1803 = vmatprep.mubr.f32.mxu0 0.0
      %1804 = vmatmul.mubr.f32.gmra.mrb[0].mxu0 %v1640
      %v1805 = vpop.f32.mrb[0].mxu0
      %v1806 = vadd.f32 %v1631, %v1805
      %v1807 = vpop.f32.mrb[0].mxu0
      %1808 = vmatprep.mubr.f32.mxu0 0.0
      %1809 = vmatmul.mubr.f32.gmra.mrb[0].mxu0 %v1643
      %v1810 = vpop.f32.mrb[0].mxu0
      %v1811 = vadd.f32 %v1631, %v1810
      %v1812 = vpop.f32.mrb[0].mxu0
      %1813 = vmatprep.mubr.f32.mxu0 0.0
      %1814 = vmatmul.mubr.f32.gmra.mrb[0].mxu0 %v1646
      %v1815 = vpop.f32.mrb[0].mxu0
      %v1816 = vadd.f32 %v1631, %v1815
      %v1817 = vpop.f32.mrb[0].mxu0
      %1818 = vmatprep.mubr.f32.mxu0 0.0
      %1819 = vmatmul.mubr.f32.gmra.mrb[0].mxu0 %v1649
      %v1820 = vpop.f32.mrb[0].mxu0
      %v1821 = vadd.f32 %v1631, %v1820
      %v1822 = vpop.f32.mrb[0].mxu0
      %1823 = vmatprep.mubr.f32.mxu0 0.0
      %1824 = vmatmul.mubr.f32.gmra.mrb[0].mxu0 %v1652
      %v1825 = vpop.f32.mrb[0].mxu0
      %v1826 = vadd.f32 %v1631, %v1825
      %v1827 = vpop.f32.mrb[0].mxu0
      %1828 = vmatprep.mubr.f32.mxu0 0.0
      %1829 = vmatmul.mubr.f32.gmra.mrb[0].mxu0 %v1655
      %v1830 = vpop.f32.mrb[0].mxu0
      %v1831 = vadd.f32 %v1631, %v1830
      %v1832 = vpop.f32.mrb[0].mxu0
      %1833 = vmatprep.mubr.f32.mxu0 0.0
      %1834 = vmatmul.mubr.f32.gmra.mrb[0].mxu0 %v1658
      %v1835 = vpop.f32.mrb[0].mxu0
      %v1836 = vadd.f32 %v1631, %v1835
      %v1837 = vpop.f32.mrb[0].mxu0
      %1838 = vmatprep.mubr.f32.mxu0 0.0
      %1839 = vmatmul.mubr.f32.gmra.mrb[0].mxu0 %v1661
      %v1840 = vpop.f32.mrb[0].mxu0
      %v1841 = vadd.f32 %v1631, %v1840
      %v1842 = vpop.f32.mrb[0].mxu0
      %1843 = vmatprep.mubr.f32.mxu0 0.0
      %1844 = vmatmul.mubr.f32.gmra.mrb[0].mxu0 %v1664
      %v1845 = vpop.f32.mrb[0].mxu0
      %v1846 = vadd.f32 %v1631, %v1845
      %v1847 = vpop.f32.mrb[0].mxu0
      %1848 = vmatprep.mubr.f32.mxu0 0.0
      %1849 = vmatmul.mubr.f32.gmra.mrb[0].mxu0 %v1667
      %v1850 = vpop.f32.mrb[0].mxu0
      %v1851 = vadd.f32 %v1631, %v1850
      %v1852 = vpop.f32.mrb[0].mxu0
      %1853 = vmatprep.mubr.f32.mxu0 0.0
      %1854 = vmatmul.mubr.f32.gmra.mrb[0].mxu0 %v1670
      %v1855 = vpop.f32.mrb[0].mxu0
      %v1856 = vadd.f32 %v1631, %v1855
      %v1857 = vpop.f32.mrb[0].mxu0
      %1858 = vmatprep.mubr.f32.mxu0 0.0
      %1859 = vmatmul.mubr.f32.gmra.mrb[0].mxu0 %v1673
      %v1860 = vpop.f32.mrb[0].mxu0
      %v1861 = vadd.f32 %v1631, %v1860
      %v1862 = vpop.f32.mrb[0].mxu0
      %1863 = vmatprep.mubr.f32.mxu0 0.0
      %1864 = vmatmul.mubr.f32.gmra.mrb[0].mxu0 %v1676
      %v1865 = vpop.f32.mrb[0].mxu0
      %v1866 = vadd.f32 %v1631, %v1865
      %v1867 = vpop.f32.mrb[0].mxu0
      %1868 = vmatprep.mubr.f32.mxu0 0.0
      %1869 = vmatmul.mubr.f32.gmra.mrb[0].mxu0 %v1679
      %v1870 = vpop.f32.mrb[0].mxu0
      %v1871 = vadd.f32 %v1631, %v1870
      %v1872 = vpop.f32.mrb[0].mxu0
      %1873 = vmatprep.mubr.f32.mxu0 0.0
      %1874 = vmatmul.mubr.f32.gmra.mrb[0].mxu0 %v1682
      %v1875 = vpop.f32.mrb[0].mxu0
      %v1876 = vadd.f32 %v1631, %v1875
      %v1877 = vpop.f32.mrb[0].mxu0
      %1878 = vmatprep.mubr.f32.mxu0 0.0
      %1879 = vmatmul.mubr.f32.gmra.mrb[0].mxu0 %v1685
      %v1880 = vpop.f32.mrb[0].mxu0
      %v1881 = vadd.f32 %v1631, %v1880
      %v1882 = vpop.f32.mrb[0].mxu0
      %1883 = vmatprep.mubr.f32.mxu0 0.0
      %1884 = vmatmul.mubr.f32.gmra.mrb[0].mxu0 %v1688
      %v1885 = vpop.f32.mrb[0].mxu0
      %v1886 = vadd.f32 %v1631, %v1885
      %v1887 = vpop.f32.mrb[0].mxu0
      %1888 = vmatprep.mubr.f32.mxu0 0.0
      %1889 = vmatmul.mubr.f32.gmra.mrb[0].mxu0 %v1691
      %v1890 = vpop.f32.mrb[0].mxu0
      %v1891 = vadd.f32 %v1631, %v1890
      %v1892 = vpop.f32.mrb[0].mxu0
      %1893 = vmatprep.mubr.f32.mxu0 0.0
      %1894 = vmatmul.mubr.f32.gmra.mrb[0].mxu0 %v1694
      %v1895 = vpop.f32.mrb[0].mxu0
      %v1896 = vadd.f32 %v1631, %v1895
      %v1897 = vpop.f32.mrb[0].mxu0
      %1898 = vmatprep.mubr.f32.mxu0 0.0
      %1899 = vmatmul.mubr.f32.gmra.mrb[0].mxu0 %v1697
      %v1900 = vpop.f32.mrb[0].mxu0
      %v1901 = vadd.f32 %v1631, %v1900
      %v1902 = vpop.f32.mrb[0].mxu0
      %1903 = vmatprep.mubr.f32.mxu0 0.0
      %1904 = vmatmul.mubr.f32.gmra.mrb[0].mxu0 %v1700
      %v1905 = vpop.f32.mrb[0].mxu0
      %v1906 = vadd.f32 %v1631, %v1905
      %v1907 = vpop.f32.mrb[0].mxu0
      %1908 = vmatprep.mubr.f32.mxu0 0.0
      %1909 = vmatmul.mubr.f32.gmra.mrb[0].mxu0 %v1703
      %v1910 = vpop.f32.mrb[0].mxu0
      %v1911 = vadd.f32 %v1631, %v1910
      %v1912 = vpop.f32.mrb[0].mxu0
      %1913 = vmatprep.mubr.f32.mxu0 0.0
      %1914 = vmatmul.mubr.f32.gmra.mrb[0].mxu0 %v1706
      %v1915 = vpop.f32.mrb[0].mxu0
      %v1916 = vadd.f32 %v1631, %v1915
      %v1917 = vpop.f32.mrb[0].mxu0
      %1918 = vmatprep.mubr.f32.mxu0 0.0
      %1919 = vmatmul.mubr.f32.gmra.mrb[0].mxu0 %v1709
      %v1920 = vpop.f32.mrb[0].mxu0
      %v1921 = vadd.f32 %v1631, %v1920
      %v1922 = vpop.f32.mrb[0].mxu0
      %1923 = vmatprep.mubr.f32.mxu0 0.0
      %1924 = vmatmul.mubr.f32.gmra.mrb[0].mxu0 %v1712
      %v1925 = vpop.f32.mrb[0].mxu0
      %v1926 = vadd.f32 %v1631, %v1925
      %v1927 = vpop.f32.mrb[0].mxu0
      %1928 = vmatprep.mubr.f32.mxu0 0.0
      %1929 = vmatmul.mubr.f32.gmra.mrb[0].mxu0 %v1715
      %v1930 = vpop.f32.mrb[0].mxu0
      %v1931 = vadd.f32 %v1631, %v1930
      %v1932 = vpop.f32.mrb[0].mxu0
      %1933 = vmatprep.mubr.f32.mxu0 0.0
      %1934 = vmatmul.mubr.f32.gmra.mrb[0].mxu0 %v1718
      %v1935 = vpop.f32.mrb[0].mxu0
      %v1936 = vadd.f32 %v1631, %v1935
      %v1937 = vpop.f32.mrb[0].mxu0
      %1938 = vmatprep.mubr.f32.mxu0 0.0
      %1939 = vmatmul.mubr.f32.gmra.mrb[0].mxu0 %v1721
      %v1940 = vpop.f32.mrb[0].mxu0
      %v1941 = vadd.f32 %v1631, %v1940
      %v1942 = vpop.f32.mrb[0].mxu0
      %1943 = vmatprep.mubr.f32.mxu0 0.0
      %1944 = vmatmul.mubr.f32.gmra.mrb[0].mxu0 %v1724
      %v1945 = vpop.f32.mrb[0].mxu0
      %v1946 = vadd.f32 %v1631, %v1945
      %v1947 = vpop.f32.mrb[0].mxu0
      %1948 = vmatprep.mubr.f32.mxu0 0.0
      %1949 = vmatmul.mubr.f32.gmra.mrb[0].mxu0 %v1727
      %v1950 = vpop.f32.mrb[0].mxu0
      %v1951 = vadd.f32 %v1631, %v1950
      %v1952 = vpop.f32.mrb[0].mxu0
      %1953 = vdwg.mxu0
      %v1954 = vadd.f32 %v1796, %v279
      %v1955 = vadd.f32 %v1801, %v280
      %v1956 = vadd.f32 %v1806, %v281
      %v1957 = vadd.f32 %v1811, %v282
      %v1958 = vadd.f32 %v1816, %v283
      %v1959 = vadd.f32 %v1821, %v284
      %v1960 = vadd.f32 %v1826, %v285
      %v1961 = vadd.f32 %v1831, %v286
      %v1962 = vadd.f32 %v1836, %v287
      %v1963 = vadd.f32 %v1841, %v288
      %v1964 = vadd.f32 %v1846, %v289
      %v1965 = vadd.f32 %v1851, %v290
      %v1966 = vadd.f32 %v1856, %v291
      %v1967 = vadd.f32 %v1861, %v292
      %v1968 = vadd.f32 %v1866, %v293
      %v1969 = vadd.f32 %v1871, %v294
      %v1970 = vadd.f32 %v1876, %v295
      %v1971 = vadd.f32 %v1881, %v296
      %v1972 = vadd.f32 %v1886, %v297
      %v1973 = vadd.f32 %v1891, %v298
      %v1974 = vadd.f32 %v1896, %v299
      %v1975 = vadd.f32 %v1901, %v300
      %v1976 = vadd.f32 %v1906, %v301
      %v1977 = vadd.f32 %v1911, %v302
      %v1978 = vadd.f32 %v1916, %v303
      %v1979 = vadd.f32 %v1921, %v304
      %v1980 = vadd.f32 %v1926, %v305
      %v1981 = vadd.f32 %v1931, %v306
      %v1982 = vadd.f32 %v1936, %v307
      %v1983 = vadd.f32 %v1941, %v308
      %v1984 = vadd.f32 %v1946, %v309
      %v1985 = vadd.f32 %v1951, %v310
      %1986 = vst.msk [vmem:[%s278] sm:$0xff] %vm319, %v1954
      %1987 = vst.msk [vmem:[%s278 + $0x8] sm:$0xff] %vm319, %v1955
      %1988 = vst.msk [vmem:[%s278 + $0x10] sm:$0xff] %vm319, %v1956
      %1989 = vst.msk [vmem:[%s278 + $0x18] sm:$0xff] %vm319, %v1957
      %1990 = vst.msk [vmem:[%s278 + $0x20] sm:$0xff] %vm319, %v1958
      %1991 = vst.msk [vmem:[%s278 + $0x28] sm:$0xff] %vm319, %v1959
      %1992 = vst.msk [vmem:[%s278 + $0x30] sm:$0xff] %vm319, %v1960
      %1993 = vst.msk [vmem:[%s278 + $0x38] sm:$0xff] %vm319, %v1961
      %1994 = vst.msk [vmem:[%s278 + $0x40] sm:$0xff] %vm319, %v1962
      %1995 = vst.msk [vmem:[%s278 + $0x48] sm:$0xff] %vm319, %v1963
      %1996 = vst.msk [vmem:[%s278 + $0x50] sm:$0xff] %vm319, %v1964
      %1997 = vst.msk [vmem:[%s278 + $0x58] sm:$0xff] %vm319, %v1965
      %1998 = vst.msk [vmem:[%s278 + $0x60] sm:$0xff] %vm319, %v1966
      %1999 = vst.msk [vmem:[%s278 + $0x68] sm:$0xff] %vm319, %v1967
      %2000 = vst.msk [vmem:[%s278 + $0x70] sm:$0xff] %vm319, %v1968
      %2001 = vst.msk [vmem:[%s278 + $0x78] sm:$0xff] %vm319, %v1969
      %2002 = vst.msk [vmem:[%s278 + $0x80] sm:$0xff] %vm319, %v1970
      %2003 = vst.msk [vmem:[%s278 + $0x88] sm:$0xff] %vm319, %v1971
      %2004 = vst.msk [vmem:[%s278 + $0x90] sm:$0xff] %vm319, %v1972
      %2005 = vst.msk [vmem:[%s278 + $0x98] sm:$0xff] %vm319, %v1973
      %2006 = vst.msk [vmem:[%s278 + $0xa0] sm:$0xff] %vm319, %v1974
      %2007 = vst.msk [vmem:[%s278 + $0xa8] sm:$0xff] %vm319, %v1975
      %2008 = vst.msk [vmem:[%s278 + $0xb0] sm:$0xff] %vm319, %v1976
      %2009 = vst.msk [vmem:[%s278 + $0xb8] sm:$0xff] %vm319, %v1977
      %2010 = vst.msk [vmem:[%s278 + $0xc0] sm:$0xff] %vm319, %v1978
      %2011 = vst.msk [vmem:[%s278 + $0xc8] sm:$0xff] %vm319, %v1979
      %2012 = vst.msk [vmem:[%s278 + $0xd0] sm:$0xff] %vm319, %v1980
      %2013 = vst.msk [vmem:[%s278 + $0xd8] sm:$0xff] %vm319, %v1981
      %2014 = vst.msk [vmem:[%s278 + $0xe0] sm:$0xff] %vm319, %v1982
      %2015 = vst.msk [vmem:[%s278 + $0xe8] sm:$0xff] %vm319, %v1983
      %2016 = vst.msk [vmem:[%s278 + $0xf0] sm:$0xff] %vm319, %v1984
      %2017 = vst.msk [vmem:[%s278 + $0xf8] sm:$0xff] %vm319, %v1985
      %p2018 = scmp.lt.s32.totalorder %s18, 1
      %s2019 = scalar_select %p2018, %s18, 1
      %s2020 = smul.addr %s2019, 32
      %s2021 = smul.addr %s2020, 8
      %s2022 = scalar_lea.vmem %s7, %s2021
      // Predicated region
      $region49: #{tpu_custom_call.1} parent=47 // pred_check
        %p2023 = pneg %p188
      $region50: #{tpu_custom_call.1} parent=47 // pred_check_branch
        %2025 = sbr.rel (%p2023) target = $region52
      $region51: #{tpu_custom_call.1} parent=47 // pred_region
        _
      $region52: #{tpu_custom_call.1} parent=47 // pred_fallthru
        _
    $region48: #{tpu_custom_call.1} parent=5 // pred_fallthru
      _
    %p2026 = scmp.le.s32.totalorder 2, %s13
    // Predicated region
    $region53: #{tpu_custom_call.1} parent=5 // pred_check
      %p2027 = pneg %p2026
    $region54: #{tpu_custom_call.1} parent=5 // pred_check_branch
      %2029 = sbr.rel (%p2027) target = $region56
    $region55: #{tpu_custom_call.1} parent=5 // pred_region
      %s2030 = ssub.s32 %s13, 2
      // Predicated region
      $region57: #{tpu_custom_call.1} parent=55 // pred_check
        %p2031 = pneg %p194
      $region58: #{tpu_custom_call.1} parent=55 // pred_check_branch
        %2033 = sbr.rel (%p2031) target = $region60
      $region59: #{tpu_custom_call.1} parent=55 // pred_region
        %p2034 = scmp.lt.s32.totalorder %s19, 1
        %s2035 = scalar_select %p2034, %s19, 1
        %s2036 = smul.addr %s2035, 32
        %s2037 = smul.addr %s2036, 8
        %s2038 = scalar_lea.vmem %s7, %s2037
      $region60: #{tpu_custom_call.1} parent=55 // pred_fallthru
        _
    $region56: #{tpu_custom_call.1} parent=5 // pred_fallthru
      _
  $region6: #{tpu_custom_call.1} parent=0 // loop_footer
    %s17 = sadd.s32 1, %s13
  $region7: #{tpu_custom_call.1} parent=0 // loop_footer_branch
    %12 = sbr.rel target = $region3
  $region8: #{tpu_custom_call.1} parent=0 // loop_exit
    _

</llo_original>
